<compile_context>
chip_gen: v7x
topology: tpu7x:2x2x1
jax: 0.10.0
libtpu: 0.0.40
codegen_flags: <defaults>
</compile_context>

<pallas_src>
import functools

import jax
import jax.numpy as jnp
from jax import lax
from jax.experimental import pallas as pl
from jax.experimental.pallas import tpu as pltpu


_NEG_BIG = -1e30  # f32 "-inf" for softmax masking (exp underflows to exactly 0)
_LANE = 128


def _round_up(n, m):
    return ((n + m - 1) // m) * m


def _pick_chunk(t, cap=64):
    """Largest divisor of t that is <= cap (falls back to 1)."""
    if t <= cap:
        return t
    for c in range(cap, 0, -1):
        if t % c == 0:
            return c
    return 1


def _rnn_chunk_kernel(xproj_ref, h0_ref, wh_ref, mask_ref,
                      out_ref, hfin_ref, h_scratch,
                      *, t_chunk, op, matmul_dtype, unroll):
    """One TIME CHUNK per grid point; hidden state carried in VMEM scratch.

    Column layout of the fused width W = OP + HPAD:
      [0:O]        logits          (O padded to OP = round_up(O, 128))
      [OP:OP+H]    new hidden h'   (H padded to HPAD = round_up(H, 128))
    """
    c = pl.program_id(1)

    # Seed the carried hidden state at the first chunk of each batch block.
    @pl.when(c == 0)
    def _():
        h_scratch[...] = h0_ref[...]

    wh = wh_ref[...]                                   # (HPAD, W), VMEM resident
    # Hoist the mask broadcast out of the step loop (JAX won't CSE it).
    addmask = jnp.broadcast_to(mask_ref[...],
                               (h_scratch.shape[0], wh.shape[1]))  # (TB, W)

    def step(t, carry):
        h = h_scratch[...]                             # (TB, HPAD) f32
        # Recurrent matmul first, streamed (precomputed) x-projection added after.
        z = jnp.dot(h.astype(matmul_dtype), wh,
                    preferred_element_type=jnp.float32) + xproj_ref[t]  # (TB, W)

        # Numerically stable log-softmax over the logit lanes only (additive mask).
        masked = z + addmask
        m = jnp.max(masked, axis=1, keepdims=True)
        shifted = masked - m
        lse = jnp.log(jnp.sum(jnp.exp(shifted), axis=1, keepdims=True))

        # Lane-aligned, lane-dense stores: first OP lanes are the log-probs.
        out_ref[t] = (shifted - lse)[:, :op].astype(out_ref.dtype)
        # Carry the hidden lanes (lane-aligned tail slice); zero rows of Wh
        # annihilate the padding next step.
        h_scratch[...] = z[:, op:]
        return carry

    lax.fori_loop(0, t_chunk, step, 0, unroll=unroll)

    # Resident output block (constant index over the chunk axis): the write at
    # the last chunk is the final hidden state.
    hfin_ref[...] = h_scratch[...]


def _prepare_params(w_i2h, b_i2h, w_i2o, b_i2o, input_size, matmul_dtype):
    """One-time fuse + transpose + lane-pad of the weights (outside the T loop)."""
    H = w_i2h.shape[0]
    O = w_i2o.shape[0]
    I = input_size
    OP = _round_up(O, _LANE)
    HPAD = _round_up(H, _LANE)
    W = OP + HPAD                      # fused width: [logits|pad | hidden|pad]

    w_i2h = w_i2h.astype(jnp.float32)
    w_i2o = w_i2o.astype(jnp.float32)

    # cat(x, h) @ [W_i2o^T | W_i2h^T] == x @ Wx + h @ Wh  (logits first).
    wx = jnp.zeros((I, W), jnp.float32)
    wx = wx.at[:, :O].set(jnp.transpose(w_i2o[:, :I]))
    wx = wx.at[:, OP:OP + H].set(jnp.transpose(w_i2h[:, :I]))

    wh = jnp.zeros((HPAD, W), jnp.float32)
    wh = wh.at[:H, :O].set(jnp.transpose(w_i2o[:, I:]))
    wh = wh.at[:H, OP:OP + H].set(jnp.transpose(w_i2h[:, I:]))

    bias = jnp.zeros((1, W), jnp.float32)
    bias = bias.at[0, :O].set(b_i2o.astype(jnp.float32))
    bias = bias.at[0, OP:OP + H].set(b_i2h.astype(jnp.float32))

    # Additive log-softmax mask: 0 on the O logit lanes, -1e30 everywhere else.
    addmask = jnp.full((1, W), _NEG_BIG, jnp.float32).at[0, :O].set(0.0)

    return wx, wh.astype(matmul_dtype), bias, addmask, OP, HPAD, W


def rnn_forward_sequence(x_seq, h0, w_i2h, b_i2h, w_i2o, b_i2o, *,
                         batch_block=None, t_chunk=None,
                         matmul_dtype=jnp.float32):
    """Module forward over a whole sequence inside one pallas_call.

    x_seq: (T, B, I), h0: (B, H).  Returns (log_probs (T, B, O), h_final (B, H))."""
    T, B, I = x_seq.shape
    H = w_i2h.shape[0]
    O = w_i2o.shape[0]

    wx, wh, bias, addmask, OP, HPAD, W = _prepare_params(
        w_i2h, b_i2h, w_i2o, b_i2o, I, matmul_dtype)

    # Batch tiling; zero-pad so any batch size works (incl. B == 1).
    # (On v6e/v7x with large batches, batch_block up to 256 fills the 256x256
    #  MXU; keep <=128 on v5e.  With >=2 batch blocks, v7x's 2nd core engages.)
    TB = batch_block or min(_round_up(B, 8), 128)
    assert TB % 8 == 0, "batch_block must be a multiple of 8"
    BP = _round_up(B, TB)
    nb = BP // TB

    # Time chunking: a whole chunk of xproj lives in VMEM per grid step.
    TC = t_chunk or _pick_chunk(T)
    assert T % TC == 0, "t_chunk must divide T"
    nc = T // TC
    unroll = bool(TC <= 32)            # fully unroll short chunks for LLO visibility

    x32 = x_seq.astype(jnp.float32)
    h0f = h0.astype(jnp.float32)
    if BP != B:
        x32 = jnp.concatenate(
            [x32, jnp.zeros((T, BP - B, I), jnp.float32)], axis=1)
        h0f = jnp.concatenate(
            [h0f, jnp.zeros((BP - B, H), jnp.float32)], axis=0)

    # Input projection + bias hoisted OUT of the recurrence: one big lane-dense
    # matmul instead of T skinny (K=I) matmuls on the serial critical path.
    xproj = jnp.einsum('tbi,iw->tbw', x32, wx,
                       precision=lax.Precision.HIGHEST) + bias      # (T, BP, W)

    h0_pad = jnp.zeros((BP, HPAD), jnp.float32).at[:, :H].set(h0f)

    kernel = functools.partial(_rnn_chunk_kernel, t_chunk=TC, op=OP,
                               matmul_dtype=matmul_dtype, unroll=unroll)

    cost = pl.CostEstimate(
        flops=int(2.0 * T * BP * HPAD * W + 8.0 * T * BP * W),
        transcendentals=int(T * BP * (W + 1)),
        bytes_accessed=int(4 * (T * BP * W + T * BP * OP + HPAD * W + 2 * BP * HPAD)),
    )

    out_lp, h_fin = pl.pallas_call(
        kernel,
        out_shape=(jax.ShapeDtypeStruct((T, BP, OP), jnp.float32),   # log-probs
                   jax.ShapeDtypeStruct((BP, HPAD), jnp.float32)),   # final hidden
        grid=(nb, nc),
        in_specs=[
            pl.BlockSpec((TC, TB, W), lambda b, c: (c, b, 0)),   # xproj chunk (streamed)
            pl.BlockSpec((TB, HPAD), lambda b, c: (b, 0)),       # h0 seed per batch block
            pl.BlockSpec((HPAD, W), lambda b, c: (0, 0)),        # Wh: VMEM resident
            pl.BlockSpec((1, W), lambda b, c: (0, 0)),           # additive softmax mask
        ],
        out_specs=(
            pl.BlockSpec((TC, TB, OP), lambda b, c: (c, b, 0)),  # log-probs per chunk
            pl.BlockSpec((TB, HPAD), lambda b, c: (b, 0)),       # resident final hidden
        ),
        scratch_shapes=[pltpu.VMEM((TB, HPAD), jnp.float32)],    # carried hidden state
        compiler_params=pltpu.CompilerParams(
            dimension_semantics=("parallel", "arbitrary")),
        cost_estimate=cost,
    )(xproj, h0_pad, wh, addmask)

    return out_lp[:, :B, :O], h_fin[:B, :H]


def rnn_step(x, h, w_i2h, b_i2h, w_i2o, b_i2o):
    """Exact analogue of RNN.forward for a single timestep: returns (output, hidden)."""
    out, h_new = rnn_forward_sequence(x[None], h, w_i2h, b_i2h, w_i2o, b_i2o)
    return out[0], h_new


def init_params(key, input_size, hidden_size, output_size):
    """Deterministic init matching nn.Linear's U(-1/sqrt(fan_in), 1/sqrt(fan_in))."""
    fan_in = input_size + hidden_size
    bound = 1.0 / (fan_in ** 0.5)
    k1, k2, k3, k4 = jax.random.split(key, 4)
    w_i2h = jax.random.uniform(k1, (hidden_size, fan_in), jnp.float32, -bound, bound)
    b_i2h = jax.random.uniform(k2, (hidden_size,), jnp.float32, -bound, bound)
    w_i2o = jax.random.uniform(k3, (output_size, fan_in), jnp.float32, -bound, bound)
    b_i2o = jax.random.uniform(k4, (output_size,), jnp.float32, -bound, bound)
    return w_i2h, b_i2h, w_i2o, b_i2o


if __name__ == "__main__":
    # Small shapes consistent with the module's driver (torch.randn(100, 32, 10)):
    # seq=8 (small), batch=32, input=10; hidden=32, output=16.
    T, B, INPUT_SIZE, HIDDEN_SIZE, OUTPUT_SIZE = 8, 32, 10, 32, 16

    key = jax.random.PRNGKey(0)
    k_x, k_x2, k_p = jax.random.split(key, 3)
    x_seq = jax.random.normal(k_x, (T, B, INPUT_SIZE), jnp.float32)
    h0 = jnp.zeros((B, HIDDEN_SIZE), jnp.float32)   # module's initHidden(), batched
    w_i2h, b_i2h, w_i2o, b_i2o = init_params(k_p, INPUT_SIZE, HIDDEN_SIZE, OUTPUT_SIZE)

    out_seq, h_final = rnn_forward_sequence(x_seq, h0, w_i2h, b_i2h, w_i2o, b_i2o)
    jax.block_until_ready((out_seq, h_final))

    # Pure-JAX reference: the module's forward applied step by step.
    def ref_step(h, x_t):
        comb = jnp.concatenate([x_t, h], axis=1)
        h_new = comb @ w_i2h.T + b_i2h
        logits = comb @ w_i2o.T + b_i2o
        return h_new, jax.nn.log_softmax(logits, axis=1)

    h_final_ref, out_seq_ref = jax.lax.scan(ref_step, h0, x_seq)
    assert jnp.allclose(out_seq, out_seq_ref, atol=1e-4), "log-prob mismatch"
    assert jnp.allclose(h_final, h_final_ref, atol=1e-4), "hidden mismatch"

    # Multi-chunk path: hidden state carried across time chunks via the grid.
    T2 = 16
    x_seq2 = jax.random.normal(k_x2, (T2, B, INPUT_SIZE), jnp.float32)
    out2, hf2 = rnn_forward_sequence(x_seq2, h0, w_i2h, b_i2h, w_i2o, b_i2o, t_chunk=8)
    hf2_ref, out2_ref = jax.lax.scan(ref_step, h0, x_seq2)
    assert jnp.allclose(out2, out2_ref, atol=1e-4), "chunked log-prob mismatch"
    assert jnp.allclose(hf2, hf2_ref, atol=1e-4), "chunked hidden mismatch"

    # Single-step, batch=1 interface (== the module's original usage); exercises
    # the batch-padding path.
    x1 = x_seq[0, :1]
    h1_0 = jnp.zeros((1, HIDDEN_SIZE), jnp.float32)
    out1, h1 = rnn_step(x1, h1_0, w_i2h, b_i2h, w_i2o, b_i2o)
    h1_ref, out1_ref = ref_step(h1_0, x1)
    assert jnp.allclose(out1, out1_ref, atol=1e-4), "single-step output mismatch"
    assert jnp.allclose(h1, h1_ref, atol=1e-4), "single-step hidden mismatch"

    print("KERNEL_OK")
</pallas_src>

<mosaic_0001>
module attributes {stable_mosaic.version = 11 : i64} {
  func.func @_rnn_chunk_kernel(%arg0: i32, %arg1: i32, %arg2: memref<8x32x256xf32, #tpu.memory_space<vmem>>, %arg3: memref<32x128xf32, #tpu.memory_space<vmem>>, %arg4: memref<128x256xf32, #tpu.memory_space<vmem>>, %arg5: memref<1x256xf32, #tpu.memory_space<vmem>>, %arg6: memref<8x32x128xf32, #tpu.memory_space<vmem>>, %arg7: memref<32x128xf32, #tpu.memory_space<vmem>>, %arg8: memref<32x128xf32, #tpu.memory_space<vmem>>) attributes {dimension_semantics = [#tpu.dimension_semantics<parallel>, #tpu.dimension_semantics<arbitrary>], iteration_bounds = array<i64: 1, 1>, scalar_prefetch = 0 : i64, scratch_operands = 1 : i64, tpu.core_type = #tpu.core_type<tc>, window_params = [{transform_indices = @transform_0, window_bounds = array<i64: 8, 32, 256>}, {transform_indices = @transform_1, window_bounds = array<i64: 32, 128>}, {pipeline_mode = #tpu.pipeline_mode<synchronous>, transform_indices = @transform_2, window_bounds = array<i64: 128, 256>}, {pipeline_mode = #tpu.pipeline_mode<synchronous>, transform_indices = @transform_3, window_bounds = array<i64: 1, 256>}, {transform_indices = @transform_4, window_bounds = array<i64: 8, 32, 128>}, {transform_indices = @transform_5, window_bounds = array<i64: 32, 128>}]} {
    %c0_i32 = arith.constant 0 : i32
    %0 = arith.cmpi eq, %arg1, %c0_i32 : i32
    %1 = arith.extui %0 : i1 to i32
    %c0_i32_0 = arith.constant 0 : i32
    %2 = arith.cmpi ne, %1, %c0_i32_0 : i32
    scf.if %2 {
      %c0_96 = arith.constant 0 : index
      %c0_97 = arith.constant 0 : index
      %201 = vector.load %arg3[%c0_96, %c0_97] : memref<32x128xf32, #tpu.memory_space<vmem>>, vector<32x128xf32>
      %c0_98 = arith.constant 0 : index
      %c0_99 = arith.constant 0 : index
      %202 = vector.load %arg8[%c0_98, %c0_99] : memref<32x128xf32, #tpu.memory_space<vmem>>, vector<32x128xf32>
      tpu.vector_store %arg8[%c0_98, %c0_99], %201 {strides = array<i32>} : memref<32x128xf32, #tpu.memory_space<vmem>>, vector<32x128xf32>,
    } else {
    }
    %c0 = arith.constant 0 : index
    %c0_1 = arith.constant 0 : index
    %3 = vector.load %arg4[%c0, %c0_1] : memref<128x256xf32, #tpu.memory_space<vmem>>, vector<128x256xf32>
    %c0_2 = arith.constant 0 : index
    %c0_3 = arith.constant 0 : index
    %4 = vector.load %arg5[%c0_2, %c0_3] : memref<1x256xf32, #tpu.memory_space<vmem>>, vector<1x256xf32>
    %5 = vector.shape_cast %4 : vector<1x256xf32> to vector<1x256xf32>
    %6 = vector.broadcast %5 : vector<1x256xf32> to vector<32x256xf32>
    %c0_i32_4 = arith.constant 0 : i32
    %c0_5 = arith.constant 0 : index
    %c0_6 = arith.constant 0 : index
    %7 = vector.load %arg8[%c0_5, %c0_6] : memref<32x128xf32, #tpu.memory_space<vmem>>, vector<32x128xf32>
    %cst = arith.constant dense<0.000000e+00> : vector<32x256xf32>
    %8 = tpu.matmul %7, %3, %cst {dimension_numbers = #tpu.dot_dimension_numbers<[1], [0], [0], [1], [0, 0, 1, 1], [], []>} : vector<32x128xf32>, vector<128x256xf32>, vector<32x256xf32> -> vector<32x256xf32>
    %9 = arith.index_cast %c0_i32_4 : i32 to index
    %c0_7 = arith.constant 0 : index
    %c0_8 = arith.constant 0 : index
    %10 = vector.load %arg2[%9, %c0_7, %c0_8] : memref<8x32x256xf32, #tpu.memory_space<vmem>>, vector<1x32x256xf32>
    %11 = vector.shape_cast %10 : vector<1x32x256xf32> to vector<32x256xf32>
    %12 = arith.addf %8, %11 : vector<32x256xf32>
    %13 = arith.addf %12, %6 : vector<32x256xf32>
    %cst_9 = arith.constant dense<0xFF800000> : vector<32xf32>
    %14 = vector.multi_reduction <maximumf>, %13, %cst_9 [1] : vector<32x256xf32> to vector<32xf32>
    %15 = vector.shape_cast %14 : vector<32xf32> to vector<32x1xf32>
    %16 = vector.broadcast %15 : vector<32x1xf32> to vector<32x256xf32>
    %17 = arith.subf %13, %16 : vector<32x256xf32>
    %18 = math.exp %17 : vector<32x256xf32>
    %cst_10 = arith.constant dense<0.000000e+00> : vector<32xf32>
    %19 = vector.multi_reduction <add>, %18, %cst_10 [1] : vector<32x256xf32> to vector<32xf32>
    %20 = vector.shape_cast %19 : vector<32xf32> to vector<32x1xf32>
    %21 = math.log %20 : vector<32x1xf32>
    %22 = vector.broadcast %21 : vector<32x1xf32> to vector<32x256xf32>
    %23 = arith.subf %17, %22 : vector<32x256xf32>
    %24 = vector.extract_strided_slice %23 {offsets = [0, 0], sizes = [32, 128], strides = [1, 1]} : vector<32x256xf32> to vector<32x128xf32>
    %25 = arith.index_cast %c0_i32_4 : i32 to index
    %c0_11 = arith.constant 0 : index
    %c0_12 = arith.constant 0 : index
    %26 = vector.load %arg6[%25, %c0_11, %c0_12] : memref<8x32x128xf32, #tpu.memory_space<vmem>>, vector<1x32x128xf32>
    %27 = vector.shape_cast %26 : vector<1x32x128xf32> to vector<32x128xf32>
    %28 = vector.shape_cast %24 : vector<32x128xf32> to vector<1x32x128xf32>
    tpu.vector_store %arg6[%25, %c0_11, %c0_12], %28 {strides = array<i32>} : memref<8x32x128xf32, #tpu.memory_space<vmem>>, vector<1x32x128xf32>,
    %29 = vector.extract_strided_slice %12 {offsets = [0, 128], sizes = [32, 128], strides = [1, 1]} : vector<32x256xf32> to vector<32x128xf32>
    %c0_13 = arith.constant 0 : index
    %c0_14 = arith.constant 0 : index
    %30 = vector.load %arg8[%c0_13, %c0_14] : memref<32x128xf32, #tpu.memory_space<vmem>>, vector<32x128xf32>
    tpu.vector_store %arg8[%c0_13, %c0_14], %29 {strides = array<i32>} : memref<32x128xf32, #tpu.memory_space<vmem>>, vector<32x128xf32>,
    %c1_i32 = arith.constant 1 : i32
    %c0_15 = arith.constant 0 : index
    %c0_16 = arith.constant 0 : index
    %31 = vector.load %arg8[%c0_15, %c0_16] : memref<32x128xf32, #tpu.memory_space<vmem>>, vector<32x128xf32>
    %cst_17 = arith.constant dense<0.000000e+00> : vector<32x256xf32>
    %32 = tpu.matmul %31, %3, %cst_17 {dimension_numbers = #tpu.dot_dimension_numbers<[1], [0], [0], [1], [0, 0, 1, 1], [], []>} : vector<32x128xf32>, vector<128x256xf32>, vector<32x256xf32> -> vector<32x256xf32>
    %33 = arith.index_cast %c1_i32 : i32 to index
    %c0_18 = arith.constant 0 : index
    %c0_19 = arith.constant 0 : index
    %34 = vector.load %arg2[%33, %c0_18, %c0_19] : memref<8x32x256xf32, #tpu.memory_space<vmem>>, vector<1x32x256xf32>
    %35 = vector.shape_cast %34 : vector<1x32x256xf32> to vector<32x256xf32>
    %36 = arith.addf %32, %35 : vector<32x256xf32>
    %37 = arith.addf %36, %6 : vector<32x256xf32>
    %cst_20 = arith.constant dense<0xFF800000> : vector<32xf32>
    %38 = vector.multi_reduction <maximumf>, %37, %cst_20 [1] : vector<32x256xf32> to vector<32xf32>
    %39 = vector.shape_cast %38 : vector<32xf32> to vector<32x1xf32>
    %40 = vector.broadcast %39 : vector<32x1xf32> to vector<32x256xf32>
    %41 = arith.subf %37, %40 : vector<32x256xf32>
    %42 = math.exp %41 : vector<32x256xf32>
    %cst_21 = arith.constant dense<0.000000e+00> : vector<32xf32>
    %43 = vector.multi_reduction <add>, %42, %cst_21 [1] : vector<32x256xf32> to vector<32xf32>
    %44 = vector.shape_cast %43 : vector<32xf32> to vector<32x1xf32>
    %45 = math.log %44 : vector<32x1xf32>
    %46 = vector.broadcast %45 : vector<32x1xf32> to vector<32x256xf32>
    %47 = arith.subf %41, %46 : vector<32x256xf32>
    %48 = vector.extract_strided_slice %47 {offsets = [0, 0], sizes = [32, 128], strides = [1, 1]} : vector<32x256xf32> to vector<32x128xf32>
    %49 = arith.index_cast %c1_i32 : i32 to index
    %c0_22 = arith.constant 0 : index
    %c0_23 = arith.constant 0 : index
    %50 = vector.load %arg6[%49, %c0_22, %c0_23] : memref<8x32x128xf32, #tpu.memory_space<vmem>>, vector<1x32x128xf32>
    %51 = vector.shape_cast %50 : vector<1x32x128xf32> to vector<32x128xf32>
    %52 = vector.shape_cast %48 : vector<32x128xf32> to vector<1x32x128xf32>
    tpu.vector_store %arg6[%49, %c0_22, %c0_23], %52 {strides = array<i32>} : memref<8x32x128xf32, #tpu.memory_space<vmem>>, vector<1x32x128xf32>,
    %53 = vector.extract_strided_slice %36 {offsets = [0, 128], sizes = [32, 128], strides = [1, 1]} : vector<32x256xf32> to vector<32x128xf32>
    %c0_24 = arith.constant 0 : index
    %c0_25 = arith.constant 0 : index
    %54 = vector.load %arg8[%c0_24, %c0_25] : memref<32x128xf32, #tpu.memory_space<vmem>>, vector<32x128xf32>
    tpu.vector_store %arg8[%c0_24, %c0_25], %53 {strides = array<i32>} : memref<32x128xf32, #tpu.memory_space<vmem>>, vector<32x128xf32>,
    %c2_i32 = arith.constant 2 : i32
    %c0_26 = arith.constant 0 : index
    %c0_27 = arith.constant 0 : index
    %55 = vector.load %arg8[%c0_26, %c0_27] : memref<32x128xf32, #tpu.memory_space<vmem>>, vector<32x128xf32>
    %cst_28 = arith.constant dense<0.000000e+00> : vector<32x256xf32>
    %56 = tpu.matmul %55, %3, %cst_28 {dimension_numbers = #tpu.dot_dimension_numbers<[1], [0], [0], [1], [0, 0, 1, 1], [], []>} : vector<32x128xf32>, vector<128x256xf32>, vector<32x256xf32> -> vector<32x256xf32>
    %57 = arith.index_cast %c2_i32 : i32 to index
    %c0_29 = arith.constant 0 : index
    %c0_30 = arith.constant 0 : index
    %58 = vector.load %arg2[%57, %c0_29, %c0_30] : memref<8x32x256xf32, #tpu.memory_space<vmem>>, vector<1x32x256xf32>
    %59 = vector.shape_cast %58 : vector<1x32x256xf32> to vector<32x256xf32>
    %60 = arith.addf %56, %59 : vector<32x256xf32>
    %61 = arith.addf %60, %6 : vector<32x256xf32>
    %cst_31 = arith.constant dense<0xFF800000> : vector<32xf32>
    %62 = vector.multi_reduction <maximumf>, %61, %cst_31 [1] : vector<32x256xf32> to vector<32xf32>
    %63 = vector.shape_cast %62 : vector<32xf32> to vector<32x1xf32>
    %64 = vector.broadcast %63 : vector<32x1xf32> to vector<32x256xf32>
    %65 = arith.subf %61, %64 : vector<32x256xf32>
    %66 = math.exp %65 : vector<32x256xf32>
    %cst_32 = arith.constant dense<0.000000e+00> : vector<32xf32>
    %67 = vector.multi_reduction <add>, %66, %cst_32 [1] : vector<32x256xf32> to vector<32xf32>
    %68 = vector.shape_cast %67 : vector<32xf32> to vector<32x1xf32>
    %69 = math.log %68 : vector<32x1xf32>
    %70 = vector.broadcast %69 : vector<32x1xf32> to vector<32x256xf32>
    %71 = arith.subf %65, %70 : vector<32x256xf32>
    %72 = vector.extract_strided_slice %71 {offsets = [0, 0], sizes = [32, 128], strides = [1, 1]} : vector<32x256xf32> to vector<32x128xf32>
    %73 = arith.index_cast %c2_i32 : i32 to index
    %c0_33 = arith.constant 0 : index
    %c0_34 = arith.constant 0 : index
    %74 = vector.load %arg6[%73, %c0_33, %c0_34] : memref<8x32x128xf32, #tpu.memory_space<vmem>>, vector<1x32x128xf32>
    %75 = vector.shape_cast %74 : vector<1x32x128xf32> to vector<32x128xf32>
    %76 = vector.shape_cast %72 : vector<32x128xf32> to vector<1x32x128xf32>
    tpu.vector_store %arg6[%73, %c0_33, %c0_34], %76 {strides = array<i32>} : memref<8x32x128xf32, #tpu.memory_space<vmem>>, vector<1x32x128xf32>,
    %77 = vector.extract_strided_slice %60 {offsets = [0, 128], sizes = [32, 128], strides = [1, 1]} : vector<32x256xf32> to vector<32x128xf32>
    %c0_35 = arith.constant 0 : index
    %c0_36 = arith.constant 0 : index
    %78 = vector.load %arg8[%c0_35, %c0_36] : memref<32x128xf32, #tpu.memory_space<vmem>>, vector<32x128xf32>
    tpu.vector_store %arg8[%c0_35, %c0_36], %77 {strides = array<i32>} : memref<32x128xf32, #tpu.memory_space<vmem>>, vector<32x128xf32>,
    %c3_i32 = arith.constant 3 : i32
    %c0_37 = arith.constant 0 : index
    %c0_38 = arith.constant 0 : index
    %79 = vector.load %arg8[%c0_37, %c0_38] : memref<32x128xf32, #tpu.memory_space<vmem>>, vector<32x128xf32>
    %cst_39 = arith.constant dense<0.000000e+00> : vector<32x256xf32>
    %80 = tpu.matmul %79, %3, %cst_39 {dimension_numbers = #tpu.dot_dimension_numbers<[1], [0], [0], [1], [0, 0, 1, 1], [], []>} : vector<32x128xf32>, vector<128x256xf32>, vector<32x256xf32> -> vector<32x256xf32>
    %81 = arith.index_cast %c3_i32 : i32 to index
    %c0_40 = arith.constant 0 : index
    %c0_41 = arith.constant 0 : index
    %82 = vector.load %arg2[%81, %c0_40, %c0_41] : memref<8x32x256xf32, #tpu.memory_space<vmem>>, vector<1x32x256xf32>
    %83 = vector.shape_cast %82 : vector<1x32x256xf32> to vector<32x256xf32>
    %84 = arith.addf %80, %83 : vector<32x256xf32>
    %85 = arith.addf %84, %6 : vector<32x256xf32>
    %cst_42 = arith.constant dense<0xFF800000> : vector<32xf32>
    %86 = vector.multi_reduction <maximumf>, %85, %cst_42 [1] : vector<32x256xf32> to vector<32xf32>
    %87 = vector.shape_cast %86 : vector<32xf32> to vector<32x1xf32>
    %88 = vector.broadcast %87 : vector<32x1xf32> to vector<32x256xf32>
    %89 = arith.subf %85, %88 : vector<32x256xf32>
    %90 = math.exp %89 : vector<32x256xf32>
    %cst_43 = arith.constant dense<0.000000e+00> : vector<32xf32>
    %91 = vector.multi_reduction <add>, %90, %cst_43 [1] : vector<32x256xf32> to vector<32xf32>
    %92 = vector.shape_cast %91 : vector<32xf32> to vector<32x1xf32>
    %93 = math.log %92 : vector<32x1xf32>
    %94 = vector.broadcast %93 : vector<32x1xf32> to vector<32x256xf32>
    %95 = arith.subf %89, %94 : vector<32x256xf32>
    %96 = vector.extract_strided_slice %95 {offsets = [0, 0], sizes = [32, 128], strides = [1, 1]} : vector<32x256xf32> to vector<32x128xf32>
    %97 = arith.index_cast %c3_i32 : i32 to index
    %c0_44 = arith.constant 0 : index
    %c0_45 = arith.constant 0 : index
    %98 = vector.load %arg6[%97, %c0_44, %c0_45] : memref<8x32x128xf32, #tpu.memory_space<vmem>>, vector<1x32x128xf32>
    %99 = vector.shape_cast %98 : vector<1x32x128xf32> to vector<32x128xf32>
    %100 = vector.shape_cast %96 : vector<32x128xf32> to vector<1x32x128xf32>
    tpu.vector_store %arg6[%97, %c0_44, %c0_45], %100 {strides = array<i32>} : memref<8x32x128xf32, #tpu.memory_space<vmem>>, vector<1x32x128xf32>,
    %101 = vector.extract_strided_slice %84 {offsets = [0, 128], sizes = [32, 128], strides = [1, 1]} : vector<32x256xf32> to vector<32x128xf32>
    %c0_46 = arith.constant 0 : index
    %c0_47 = arith.constant 0 : index
    %102 = vector.load %arg8[%c0_46, %c0_47] : memref<32x128xf32, #tpu.memory_space<vmem>>, vector<32x128xf32>
    tpu.vector_store %arg8[%c0_46, %c0_47], %101 {strides = array<i32>} : memref<32x128xf32, #tpu.memory_space<vmem>>, vector<32x128xf32>,
    %c4_i32 = arith.constant 4 : i32
    %c0_48 = arith.constant 0 : index
    %c0_49 = arith.constant 0 : index
    %103 = vector.load %arg8[%c0_48, %c0_49] : memref<32x128xf32, #tpu.memory_space<vmem>>, vector<32x128xf32>
    %cst_50 = arith.constant dense<0.000000e+00> : vector<32x256xf32>
    %104 = tpu.matmul %103, %3, %cst_50 {dimension_numbers = #tpu.dot_dimension_numbers<[1], [0], [0], [1], [0, 0, 1, 1], [], []>} : vector<32x128xf32>, vector<128x256xf32>, vector<32x256xf32> -> vector<32x256xf32>
    %105 = arith.index_cast %c4_i32 : i32 to index
    %c0_51 = arith.constant 0 : index
    %c0_52 = arith.constant 0 : index
    %106 = vector.load %arg2[%105, %c0_51, %c0_52] : memref<8x32x256xf32, #tpu.memory_space<vmem>>, vector<1x32x256xf32>
    %107 = vector.shape_cast %106 : vector<1x32x256xf32> to vector<32x256xf32>
    %108 = arith.addf %104, %107 : vector<32x256xf32>
    %109 = arith.addf %108, %6 : vector<32x256xf32>
    %cst_53 = arith.constant dense<0xFF800000> : vector<32xf32>
    %110 = vector.multi_reduction <maximumf>, %109, %cst_53 [1] : vector<32x256xf32> to vector<32xf32>
    %111 = vector.shape_cast %110 : vector<32xf32> to vector<32x1xf32>
    %112 = vector.broadcast %111 : vector<32x1xf32> to vector<32x256xf32>
    %113 = arith.subf %109, %112 : vector<32x256xf32>
    %114 = math.exp %113 : vector<32x256xf32>
    %cst_54 = arith.constant dense<0.000000e+00> : vector<32xf32>
    %115 = vector.multi_reduction <add>, %114, %cst_54 [1] : vector<32x256xf32> to vector<32xf32>
    %116 = vector.shape_cast %115 : vector<32xf32> to vector<32x1xf32>
    %117 = math.log %116 : vector<32x1xf32>
    %118 = vector.broadcast %117 : vector<32x1xf32> to vector<32x256xf32>
    %119 = arith.subf %113, %118 : vector<32x256xf32>
    %120 = vector.extract_strided_slice %119 {offsets = [0, 0], sizes = [32, 128], strides = [1, 1]} : vector<32x256xf32> to vector<32x128xf32>
    %121 = arith.index_cast %c4_i32 : i32 to index
    %c0_55 = arith.constant 0 : index
    %c0_56 = arith.constant 0 : index
    %122 = vector.load %arg6[%121, %c0_55, %c0_56] : memref<8x32x128xf32, #tpu.memory_space<vmem>>, vector<1x32x128xf32>
    %123 = vector.shape_cast %122 : vector<1x32x128xf32> to vector<32x128xf32>
    %124 = vector.shape_cast %120 : vector<32x128xf32> to vector<1x32x128xf32>
    tpu.vector_store %arg6[%121, %c0_55, %c0_56], %124 {strides = array<i32>} : memref<8x32x128xf32, #tpu.memory_space<vmem>>, vector<1x32x128xf32>,
    %125 = vector.extract_strided_slice %108 {offsets = [0, 128], sizes = [32, 128], strides = [1, 1]} : vector<32x256xf32> to vector<32x128xf32>
    %c0_57 = arith.constant 0 : index
    %c0_58 = arith.constant 0 : index
    %126 = vector.load %arg8[%c0_57, %c0_58] : memref<32x128xf32, #tpu.memory_space<vmem>>, vector<32x128xf32>
    tpu.vector_store %arg8[%c0_57, %c0_58], %125 {strides = array<i32>} : memref<32x128xf32, #tpu.memory_space<vmem>>, vector<32x128xf32>,
    %c5_i32 = arith.constant 5 : i32
    %c0_59 = arith.constant 0 : index
    %c0_60 = arith.constant 0 : index
    %127 = vector.load %arg8[%c0_59, %c0_60] : memref<32x128xf32, #tpu.memory_space<vmem>>, vector<32x128xf32>
    %cst_61 = arith.constant dense<0.000000e+00> : vector<32x256xf32>
    %128 = tpu.matmul %127, %3, %cst_61 {dimension_numbers = #tpu.dot_dimension_numbers<[1], [0], [0], [1], [0, 0, 1, 1], [], []>} : vector<32x128xf32>, vector<128x256xf32>, vector<32x256xf32> -> vector<32x256xf32>
    %129 = arith.index_cast %c5_i32 : i32 to index
    %c0_62 = arith.constant 0 : index
    %c0_63 = arith.constant 0 : index
    %130 = vector.load %arg2[%129, %c0_62, %c0_63] : memref<8x32x256xf32, #tpu.memory_space<vmem>>, vector<1x32x256xf32>
    %131 = vector.shape_cast %130 : vector<1x32x256xf32> to vector<32x256xf32>
    %132 = arith.addf %128, %131 : vector<32x256xf32>
    %133 = arith.addf %132, %6 : vector<32x256xf32>
    %cst_64 = arith.constant dense<0xFF800000> : vector<32xf32>
    %134 = vector.multi_reduction <maximumf>, %133, %cst_64 [1] : vector<32x256xf32> to vector<32xf32>
    %135 = vector.shape_cast %134 : vector<32xf32> to vector<32x1xf32>
    %136 = vector.broadcast %135 : vector<32x1xf32> to vector<32x256xf32>
    %137 = arith.subf %133, %136 : vector<32x256xf32>
    %138 = math.exp %137 : vector<32x256xf32>
    %cst_65 = arith.constant dense<0.000000e+00> : vector<32xf32>
    %139 = vector.multi_reduction <add>, %138, %cst_65 [1] : vector<32x256xf32> to vector<32xf32>
    %140 = vector.shape_cast %139 : vector<32xf32> to vector<32x1xf32>
    %141 = math.log %140 : vector<32x1xf32>
    %142 = vector.broadcast %141 : vector<32x1xf32> to vector<32x256xf32>
    %143 = arith.subf %137, %142 : vector<32x256xf32>
    %144 = vector.extract_strided_slice %143 {offsets = [0, 0], sizes = [32, 128], strides = [1, 1]} : vector<32x256xf32> to vector<32x128xf32>
    %145 = arith.index_cast %c5_i32 : i32 to index
    %c0_66 = arith.constant 0 : index
    %c0_67 = arith.constant 0 : index
    %146 = vector.load %arg6[%145, %c0_66, %c0_67] : memref<8x32x128xf32, #tpu.memory_space<vmem>>, vector<1x32x128xf32>
    %147 = vector.shape_cast %146 : vector<1x32x128xf32> to vector<32x128xf32>
    %148 = vector.shape_cast %144 : vector<32x128xf32> to vector<1x32x128xf32>
    tpu.vector_store %arg6[%145, %c0_66, %c0_67], %148 {strides = array<i32>} : memref<8x32x128xf32, #tpu.memory_space<vmem>>, vector<1x32x128xf32>,
    %149 = vector.extract_strided_slice %132 {offsets = [0, 128], sizes = [32, 128], strides = [1, 1]} : vector<32x256xf32> to vector<32x128xf32>
    %c0_68 = arith.constant 0 : index
    %c0_69 = arith.constant 0 : index
    %150 = vector.load %arg8[%c0_68, %c0_69] : memref<32x128xf32, #tpu.memory_space<vmem>>, vector<32x128xf32>
    tpu.vector_store %arg8[%c0_68, %c0_69], %149 {strides = array<i32>} : memref<32x128xf32, #tpu.memory_space<vmem>>, vector<32x128xf32>,
    %c6_i32 = arith.constant 6 : i32
    %c0_70 = arith.constant 0 : index
    %c0_71 = arith.constant 0 : index
    %151 = vector.load %arg8[%c0_70, %c0_71] : memref<32x128xf32, #tpu.memory_space<vmem>>, vector<32x128xf32>
    %cst_72 = arith.constant dense<0.000000e+00> : vector<32x256xf32>
    %152 = tpu.matmul %151, %3, %cst_72 {dimension_numbers = #tpu.dot_dimension_numbers<[1], [0], [0], [1], [0, 0, 1, 1], [], []>} : vector<32x128xf32>, vector<128x256xf32>, vector<32x256xf32> -> vector<32x256xf32>
    %153 = arith.index_cast %c6_i32 : i32 to index
    %c0_73 = arith.constant 0 : index
    %c0_74 = arith.constant 0 : index
    %154 = vector.load %arg2[%153, %c0_73, %c0_74] : memref<8x32x256xf32, #tpu.memory_space<vmem>>, vector<1x32x256xf32>
    %155 = vector.shape_cast %154 : vector<1x32x256xf32> to vector<32x256xf32>
    %156 = arith.addf %152, %155 : vector<32x256xf32>
    %157 = arith.addf %156, %6 : vector<32x256xf32>
    %cst_75 = arith.constant dense<0xFF800000> : vector<32xf32>
    %158 = vector.multi_reduction <maximumf>, %157, %cst_75 [1] : vector<32x256xf32> to vector<32xf32>
    %159 = vector.shape_cast %158 : vector<32xf32> to vector<32x1xf32>
    %160 = vector.broadcast %159 : vector<32x1xf32> to vector<32x256xf32>
    %161 = arith.subf %157, %160 : vector<32x256xf32>
    %162 = math.exp %161 : vector<32x256xf32>
    %cst_76 = arith.constant dense<0.000000e+00> : vector<32xf32>
    %163 = vector.multi_reduction <add>, %162, %cst_76 [1] : vector<32x256xf32> to vector<32xf32>
    %164 = vector.shape_cast %163 : vector<32xf32> to vector<32x1xf32>
    %165 = math.log %164 : vector<32x1xf32>
    %166 = vector.broadcast %165 : vector<32x1xf32> to vector<32x256xf32>
    %167 = arith.subf %161, %166 : vector<32x256xf32>
    %168 = vector.extract_strided_slice %167 {offsets = [0, 0], sizes = [32, 128], strides = [1, 1]} : vector<32x256xf32> to vector<32x128xf32>
    %169 = arith.index_cast %c6_i32 : i32 to index
    %c0_77 = arith.constant 0 : index
    %c0_78 = arith.constant 0 : index
    %170 = vector.load %arg6[%169, %c0_77, %c0_78] : memref<8x32x128xf32, #tpu.memory_space<vmem>>, vector<1x32x128xf32>
    %171 = vector.shape_cast %170 : vector<1x32x128xf32> to vector<32x128xf32>
    %172 = vector.shape_cast %168 : vector<32x128xf32> to vector<1x32x128xf32>
    tpu.vector_store %arg6[%169, %c0_77, %c0_78], %172 {strides = array<i32>} : memref<8x32x128xf32, #tpu.memory_space<vmem>>, vector<1x32x128xf32>,
    %173 = vector.extract_strided_slice %156 {offsets = [0, 128], sizes = [32, 128], strides = [1, 1]} : vector<32x256xf32> to vector<32x128xf32>
    %c0_79 = arith.constant 0 : index
    %c0_80 = arith.constant 0 : index
    %174 = vector.load %arg8[%c0_79, %c0_80] : memref<32x128xf32, #tpu.memory_space<vmem>>, vector<32x128xf32>
    tpu.vector_store %arg8[%c0_79, %c0_80], %173 {strides = array<i32>} : memref<32x128xf32, #tpu.memory_space<vmem>>, vector<32x128xf32>,
    %c7_i32 = arith.constant 7 : i32
    %c0_81 = arith.constant 0 : index
    %c0_82 = arith.constant 0 : index
    %175 = vector.load %arg8[%c0_81, %c0_82] : memref<32x128xf32, #tpu.memory_space<vmem>>, vector<32x128xf32>
    %cst_83 = arith.constant dense<0.000000e+00> : vector<32x256xf32>
    %176 = tpu.matmul %175, %3, %cst_83 {dimension_numbers = #tpu.dot_dimension_numbers<[1], [0], [0], [1], [0, 0, 1, 1], [], []>} : vector<32x128xf32>, vector<128x256xf32>, vector<32x256xf32> -> vector<32x256xf32>
    %177 = arith.index_cast %c7_i32 : i32 to index
    %c0_84 = arith.constant 0 : index
    %c0_85 = arith.constant 0 : index
    %178 = vector.load %arg2[%177, %c0_84, %c0_85] : memref<8x32x256xf32, #tpu.memory_space<vmem>>, vector<1x32x256xf32>
    %179 = vector.shape_cast %178 : vector<1x32x256xf32> to vector<32x256xf32>
    %180 = arith.addf %176, %179 : vector<32x256xf32>
    %181 = arith.addf %180, %6 : vector<32x256xf32>
    %cst_86 = arith.constant dense<0xFF800000> : vector<32xf32>
    %182 = vector.multi_reduction <maximumf>, %181, %cst_86 [1] : vector<32x256xf32> to vector<32xf32>
    %183 = vector.shape_cast %182 : vector<32xf32> to vector<32x1xf32>
    %184 = vector.broadcast %183 : vector<32x1xf32> to vector<32x256xf32>
    %185 = arith.subf %181, %184 : vector<32x256xf32>
    %186 = math.exp %185 : vector<32x256xf32>
    %cst_87 = arith.constant dense<0.000000e+00> : vector<32xf32>
    %187 = vector.multi_reduction <add>, %186, %cst_87 [1] : vector<32x256xf32> to vector<32xf32>
    %188 = vector.shape_cast %187 : vector<32xf32> to vector<32x1xf32>
    %189 = math.log %188 : vector<32x1xf32>
    %190 = vector.broadcast %189 : vector<32x1xf32> to vector<32x256xf32>
    %191 = arith.subf %185, %190 : vector<32x256xf32>
    %192 = vector.extract_strided_slice %191 {offsets = [0, 0], sizes = [32, 128], strides = [1, 1]} : vector<32x256xf32> to vector<32x128xf32>
    %193 = arith.index_cast %c7_i32 : i32 to index
    %c0_88 = arith.constant 0 : index
    %c0_89 = arith.constant 0 : index
    %194 = vector.load %arg6[%193, %c0_88, %c0_89] : memref<8x32x128xf32, #tpu.memory_space<vmem>>, vector<1x32x128xf32>
    %195 = vector.shape_cast %194 : vector<1x32x128xf32> to vector<32x128xf32>
    %196 = vector.shape_cast %192 : vector<32x128xf32> to vector<1x32x128xf32>
    tpu.vector_store %arg6[%193, %c0_88, %c0_89], %196 {strides = array<i32>} : memref<8x32x128xf32, #tpu.memory_space<vmem>>, vector<1x32x128xf32>,
    %197 = vector.extract_strided_slice %180 {offsets = [0, 128], sizes = [32, 128], strides = [1, 1]} : vector<32x256xf32> to vector<32x128xf32>
    %c0_90 = arith.constant 0 : index
    %c0_91 = arith.constant 0 : index
    %198 = vector.load %arg8[%c0_90, %c0_91] : memref<32x128xf32, #tpu.memory_space<vmem>>, vector<32x128xf32>
    tpu.vector_store %arg8[%c0_90, %c0_91], %197 {strides = array<i32>} : memref<32x128xf32, #tpu.memory_space<vmem>>, vector<32x128xf32>,
    %c8_i32 = arith.constant 8 : i32
    %c0_92 = arith.constant 0 : index
    %c0_93 = arith.constant 0 : index
    %199 = vector.load %arg8[%c0_92, %c0_93] : memref<32x128xf32, #tpu.memory_space<vmem>>, vector<32x128xf32>
    %c0_94 = arith.constant 0 : index
    %c0_95 = arith.constant 0 : index
    %200 = vector.load %arg7[%c0_94, %c0_95] : memref<32x128xf32, #tpu.memory_space<vmem>>, vector<32x128xf32>
    tpu.vector_store %arg7[%c0_94, %c0_95], %199 {strides = array<i32>} : memref<32x128xf32, #tpu.memory_space<vmem>>, vector<32x128xf32>,
    return
  }
  func.func @transform_0(%arg0: i32, %arg1: i32) -> (i32, i32, i32) {
    %c0_i32 = arith.constant 0 : i32
    %c0_i32_0 = arith.constant 0 : i32
    return %arg1, %arg0, %c0_i32 : i32, i32, i32
  }
  func.func @transform_1(%arg0: i32, %arg1: i32) -> (i32, i32) {
    %c0_i32 = arith.constant 0 : i32
    %c0_i32_0 = arith.constant 0 : i32
    return %arg0, %c0_i32 : i32, i32
  }
  func.func @transform_2(%arg0: i32, %arg1: i32) -> (i32, i32) {
    %c0_i32 = arith.constant 0 : i32
    %c0_i32_0 = arith.constant 0 : i32
    %c0_i32_1 = arith.constant 0 : i32
    return %c0_i32, %c0_i32_0 : i32, i32
  }
  func.func @transform_3(%arg0: i32, %arg1: i32) -> (i32, i32) {
    %c0_i32 = arith.constant 0 : i32
    %c0_i32_0 = arith.constant 0 : i32
    %c0_i32_1 = arith.constant 0 : i32
    return %c0_i32, %c0_i32_0 : i32, i32
  }
  func.func @transform_4(%arg0: i32, %arg1: i32) -> (i32, i32, i32) {
    %c0_i32 = arith.constant 0 : i32
    %c0_i32_0 = arith.constant 0 : i32
    return %arg1, %arg0, %c0_i32 : i32, i32, i32
  }
  func.func @transform_5(%arg0: i32, %arg1: i32) -> (i32, i32) {
    %c0_i32 = arith.constant 0 : i32
    %c0_i32_0 = arith.constant 0 : i32
    return %arg0, %c0_i32 : i32, i32
  }
}

</mosaic_0001>

<llo_original>
// kernel: tpu_custom_call.1
$region0: #{tpu_custom_call.1}
  #allocation0 [shape = 'u32[]', space=smem, size = 0x4, offset = 0x4, fixed_abs, tag = 'smem constant byte address 0x4 - core index']
  #allocation1 [shape = 'u32[144,128]{1,0:T(1,128)}', space=vmem, size = 0x12000, scoped, tag = 'internal scratch']
  #allocation2 [shape = 'f32[32,128]{1,0:T(8,128)}', space=vmem, size = 0x4000, scoped, tag = 'scratch operand']
  %s0 = inlined_call_operand.hbm [shape: f32[8,32,256], index: 0, kind: input, shape index: {}]
  %s1 = inlined_call_operand.hbm [shape: f32[32,128], index: 1, kind: input, shape index: {}]
  %s2 = inlined_call_operand.hbm [shape: f32[128,256], index: 2, kind: input, shape index: {}]
  %s3 = inlined_call_operand.vmem [shape: f32[1,256], index: 3, kind: input, shape index: {}]
  %s4 = inlined_call_operand.hbm [shape: f32[8,32,128], index: 4, kind: output, shape index: {0}]
  %s5 = inlined_call_operand.hbm [shape: f32[32,128], index: 5, kind: output, shape index: {1}]
  %6 = xla_tuple %s4, %s5
  %s7 = sld [smem:[#allocation0]]
  $region50: #{tpu_custom_call.1} parent=0
    _
  %s9 = ssub.s32 1, %s7
  %s10 = scalar_select 0, %s9, %s7
  $region1: #{tpu_custom_call.1} parent=0
    #allocation3 [shape = 'u8[262144]{0}', space=vmem, size = 0x40000, scoped, tag = 'input window, operand 0, single buffered']
    #allocation4 [shape = 's32[1]{0}', space=sflag, size = 0x4, scoped, tag = 'scoped memory for tpu_custom_call.1']
    #allocation5 [shape = 's32[1]{0}', space=sflag, size = 0x4, scoped, tag = 'scoped memory for tpu_custom_call.1']
    #allocation6 [shape = 'u8[16384]{0}', space=vmem, size = 0x4000, scoped, tag = 'input window, operand 1, single buffered']
    #allocation7 [shape = 's32[1]{0}', space=sflag, size = 0x4, scoped, tag = 'scoped memory for tpu_custom_call.1']
    #allocation8 [shape = 'u8[131072]{0}', space=vmem, size = 0x20000, scoped, tag = 'input window, operand 2, single buffered']
    #allocation9 [shape = 'u8[131072]{0}', space=vmem, size = 0x20000, scoped, tag = 'output window, operand 0, single buffered']
    #allocation10 [shape = 'u8[16384]{0}', space=vmem, size = 0x4000, scoped, tag = 'output window, operand 1, single buffered']
    #allocation11 [shape = 's32[1]{0}', space=sflag, size = 0x4, scoped, tag = 'scoped memory for tpu_custom_call.1']
    %11 = vsyncpa [#allocation4], 0
    %12 = vsyncpa [#allocation7], 0
    %13 = vsyncpa [#allocation5], 0
    %14 = vsyncpa [#allocation11], 0
    // Predicated region
    $region2: #{tpu_custom_call.1} parent=1 // pred_check
      _
    $region3: #{tpu_custom_call.1} parent=1 // pred_check_branch
      %16 = sbr.rel (0) target = $region5
    $region4: #{tpu_custom_call.1} parent=1 // pred_region
      %s18 = ssub.s32 8192, 8192
      %19 = vsyncadd [#allocation4], %s18
      %s20 = sshll.u32 [#allocation3], 4
      %s21 = int_to_ptr.vmem [resolvable:$true] %s20
      %26 = dma.hbm_to_vmem [thread:$0]  %s0, 8192, %s21, [#allocation4], 256, 256, 16
    $region5: #{tpu_custom_call.1} parent=1 // pred_fallthru
      _
    // Predicated region
    $region6: #{tpu_custom_call.1} parent=1 // pred_check
      _
    $region7: #{tpu_custom_call.1} parent=1 // pred_check_branch
      %28 = sbr.rel (0) target = $region9
    $region8: #{tpu_custom_call.1} parent=1 // pred_region
      %s30 = ssub.s32 512, 512
      %31 = vsyncadd [#allocation7], %s30
      %s32 = sshll.u32 [#allocation6], 4
      %s33 = int_to_ptr.vmem [resolvable:$true] %s32
      %38 = dma.hbm_to_vmem [thread:$0]  %s1, 512, %s33, [#allocation7], 128, 128, 8
    $region9: #{tpu_custom_call.1} parent=1 // pred_fallthru
      _
    // Predicated region
    $region10: #{tpu_custom_call.1} parent=1 // pred_check
      _
    $region11: #{tpu_custom_call.1} parent=1 // pred_check_branch
      %40 = sbr.rel (0) target = $region13
    $region12: #{tpu_custom_call.1} parent=1 // pred_region
      %s42 = ssub.s32 4096, 4096
      %43 = vsyncadd [#allocation7], %s42
      %s44 = sshll.u32 [#allocation8], 4
      %s45 = int_to_ptr.vmem [resolvable:$true] %s44
      %50 = dma.hbm_to_vmem [thread:$0]  %s2, 4096, %s45, [#allocation7], 256, 256, 16
    $region13: #{tpu_custom_call.1} parent=1 // pred_fallthru
      _
    // Predicated region
    $region14: #{tpu_custom_call.1} parent=1 // pred_check
      _
    $region15: #{tpu_custom_call.1} parent=1 // pred_check_branch
      %52 = sbr.rel (0) target = $region17
    $region16: #{tpu_custom_call.1} parent=1 // pred_region
      _
    $region17: #{tpu_custom_call.1} parent=1 // pred_fallthru
      _
    // Predicated region
    $region18: #{tpu_custom_call.1} parent=1 // pred_check
      _
    $region19: #{tpu_custom_call.1} parent=1 // pred_check_branch
      %54 = sbr.rel (0) target = $region21
    $region20: #{tpu_custom_call.1} parent=1 // pred_region
      %55 = dma.done [#allocation4], 8192
    $region21: #{tpu_custom_call.1} parent=1 // pred_fallthru
      _
    // Predicated region
    $region22: #{tpu_custom_call.1} parent=1 // pred_check
      _
    $region23: #{tpu_custom_call.1} parent=1 // pred_check_branch
      %57 = sbr.rel (0) target = $region25
    $region24: #{tpu_custom_call.1} parent=1 // pred_region
      %58 = dma.done [#allocation7], 512
    $region25: #{tpu_custom_call.1} parent=1 // pred_fallthru
      _
    // Predicated region
    $region26: #{tpu_custom_call.1} parent=1 // pred_check
      _
    $region27: #{tpu_custom_call.1} parent=1 // pred_check_branch
      %60 = sbr.rel (0) target = $region29
    $region28: #{tpu_custom_call.1} parent=1 // pred_region
      %61 = dma.done [#allocation7], 4096
    $region29: #{tpu_custom_call.1} parent=1 // pred_fallthru
      _
    %p62 = scmp.eq.s32.totalorder 0, 0
    // Predicated region
    $region30: #{tpu_custom_call.1} parent=1 // pred_check
      %p63 = pneg %p62
    $region31: #{tpu_custom_call.1} parent=1 // pred_check_branch
      %65 = sbr.rel (%p63) target = $region33
    $region32: #{tpu_custom_call.1} parent=1 // pred_region
      %v66 = vld [vmem:[#allocation6] sm:$0xff]
      %v67 = vld [vmem:[#allocation6 + $0x8] sm:$0xff]
      %v68 = vld [vmem:[#allocation6 + $0x10] sm:$0xff]
      %v69 = vld [vmem:[#allocation6 + $0x18] sm:$0xff]
      %70 = vst [vmem:[#allocation2] sm:$0xff] %v66
      %71 = vst [vmem:[#allocation2 + $0x8] sm:$0xff] %v67
      %72 = vst [vmem:[#allocation2 + $0x10] sm:$0xff] %v68
      %73 = vst [vmem:[#allocation2 + $0x18] sm:$0xff] %v69
    $region33: #{tpu_custom_call.1} parent=1 // pred_fallthru
      _
    %v74 = vld [vmem:[#allocation8] sm:$0xff]
    %v75 = vld [vmem:[#allocation8 + $0x8] sm:$0xff]
    %v76 = vld [vmem:[#allocation8 + $0x10] sm:$0xff]
    %v77 = vld [vmem:[#allocation8 + $0x18] sm:$0xff]
    %v78 = vld [vmem:[#allocation8 + $0x20] sm:$0xff]
    %v79 = vld [vmem:[#allocation8 + $0x28] sm:$0xff]
    %v80 = vld [vmem:[#allocation8 + $0x30] sm:$0xff]
    %v81 = vld [vmem:[#allocation8 + $0x38] sm:$0xff]
    %v82 = vld [vmem:[#allocation8 + $0x40] sm:$0xff]
    %v83 = vld [vmem:[#allocation8 + $0x48] sm:$0xff]
    %v84 = vld [vmem:[#allocation8 + $0x50] sm:$0xff]
    %v85 = vld [vmem:[#allocation8 + $0x58] sm:$0xff]
    %v86 = vld [vmem:[#allocation8 + $0x60] sm:$0xff]
    %v87 = vld [vmem:[#allocation8 + $0x68] sm:$0xff]
    %v88 = vld [vmem:[#allocation8 + $0x70] sm:$0xff]
    %v89 = vld [vmem:[#allocation8 + $0x78] sm:$0xff]
    %v90 = vld [vmem:[#allocation8 + $0x80] sm:$0xff]
    %v91 = vld [vmem:[#allocation8 + $0x88] sm:$0xff]
    %v92 = vld [vmem:[#allocation8 + $0x90] sm:$0xff]
    %v93 = vld [vmem:[#allocation8 + $0x98] sm:$0xff]
    %v94 = vld [vmem:[#allocation8 + $0xa0] sm:$0xff]
    %v95 = vld [vmem:[#allocation8 + $0xa8] sm:$0xff]
    %v96 = vld [vmem:[#allocation8 + $0xb0] sm:$0xff]
    %v97 = vld [vmem:[#allocation8 + $0xb8] sm:$0xff]
    %v98 = vld [vmem:[#allocation8 + $0xc0] sm:$0xff]
    %v99 = vld [vmem:[#allocation8 + $0xc8] sm:$0xff]
    %v100 = vld [vmem:[#allocation8 + $0xd0] sm:$0xff]
    %v101 = vld [vmem:[#allocation8 + $0xd8] sm:$0xff]
    %v102 = vld [vmem:[#allocation8 + $0xe0] sm:$0xff]
    %v103 = vld [vmem:[#allocation8 + $0xe8] sm:$0xff]
    %v104 = vld [vmem:[#allocation8 + $0xf0] sm:$0xff]
    %v105 = vld [vmem:[#allocation8 + $0xf8] sm:$0xff]
    %v106 = vld [vmem:[%s3] sm:$0x3]
    %v108 = vlaneseq
    %v109 = vshrl.u32 %v108, 7
    %v110 = vsub.s32 0, %v109
    %v111 = vrot.slane %v106, %v110
    %v112 = vlaneseq
    %v113 = vshrl.u32 %v112, 7
    %v114 = vsub.s32 1, %v113
    %v115 = vrot.slane %v106, %v114
    %v118 = vld [vmem:[#allocation2] sm:$0xff]
    %v119 = vld [vmem:[#allocation2 + $0x8] sm:$0xff]
    %v120 = vld [vmem:[#allocation2 + $0x10] sm:$0xff]
    %v121 = vld [vmem:[#allocation2 + $0x18] sm:$0xff]
    %v122 = vld [vmem:[#allocation3] sm:$0xff]
    %v123 = vld [vmem:[#allocation3 + $0x8] sm:$0xff]
    %v124 = vld [vmem:[#allocation3 + $0x10] sm:$0xff]
    %v125 = vld [vmem:[#allocation3 + $0x18] sm:$0xff]
    %v126 = vld [vmem:[#allocation3 + $0x20] sm:$0xff]
    %v127 = vld [vmem:[#allocation3 + $0x28] sm:$0xff]
    %v128 = vld [vmem:[#allocation3 + $0x30] sm:$0xff]
    %v129 = vld [vmem:[#allocation3 + $0x38] sm:$0xff]
    %130 = vmatprep.subr.mxu0 %v75
    %131 = vmatpush1.msra.mxu0 %v74
    %132 = vmatprep.subr.mxu0 %v77
    %133 = vmatpush1.msra.mxu0 %v76
    %134 = vmatprep.subr.mxu0 %v79
    %135 = vmatpush1.msra.mxu0 %v78
    %136 = vmatprep.subr.mxu0 %v81
    %137 = vmatpush1.msra.mxu0 %v80
    %138 = vmatprep.subr.mxu0 %v83
    %139 = vmatpush1.msra.mxu0 %v82
    %140 = vmatprep.subr.mxu0 %v85
    %141 = vmatpush1.msra.mxu0 %v84
    %142 = vmatprep.subr.mxu0 %v87
    %143 = vmatpush1.msra.mxu0 %v86
    %144 = vmatprep.subr.mxu0 %v89
    %145 = vmatpush1.msra.mxu0 %v88
    %146 = vmatprep.subr.mxu0 %v91
    %147 = vmatpush1.msra.mxu0 %v90
    %148 = vmatprep.subr.mxu0 %v93
    %149 = vmatpush1.msra.mxu0 %v92
    %150 = vmatprep.subr.mxu0 %v95
    %151 = vmatpush1.msra.mxu0 %v94
    %152 = vmatprep.subr.mxu0 %v97
    %153 = vmatpush1.msra.mxu0 %v96
    %154 = vmatprep.subr.mxu0 %v99
    %155 = vmatpush1.msra.mxu0 %v98
    %156 = vmatprep.subr.mxu0 %v101
    %157 = vmatpush1.msra.mxu0 %v100
    %158 = vmatprep.subr.mxu0 %v103
    %159 = vmatpush1.msra.mxu0 %v102
    %160 = vmatprep.subr.mxu0 %v105
    %161 = vmatpush1.msra.mxu0 %v104
    %162 = vmatprep.subr.mxu0 0.0
    %163 = vmatpush1.msra.mxu0 0.0
    %164 = vmatprep.subr.mxu0 0.0
    %165 = vmatpush1.msra.mxu0 0.0
    %166 = vmatprep.subr.mxu0 0.0
    %167 = vmatpush1.msra.mxu0 0.0
    %168 = vmatprep.subr.mxu0 0.0
    %169 = vmatpush1.msra.mxu0 0.0
    %170 = vmatprep.subr.mxu0 0.0
    %171 = vmatpush1.msra.mxu0 0.0
    %172 = vmatprep.subr.mxu0 0.0
    %173 = vmatpush1.msra.mxu0 0.0
    %174 = vmatprep.subr.mxu0 0.0
    %175 = vmatpush1.msra.mxu0 0.0
    %176 = vmatprep.subr.mxu0 0.0
    %177 = vmatpush1.msra.mxu0 0.0
    %178 = vmatprep.subr.mxu0 0.0
    %179 = vmatpush1.msra.mxu0 0.0
    %180 = vmatprep.subr.mxu0 0.0
    %181 = vmatpush1.msra.mxu0 0.0
    %182 = vmatprep.subr.mxu0 0.0
    %183 = vmatpush1.msra.mxu0 0.0
    %184 = vmatprep.subr.mxu0 0.0
    %185 = vmatpush1.msra.mxu0 0.0
    %186 = vmatprep.subr.mxu0 0.0
    %187 = vmatpush1.msra.mxu0 0.0
    %188 = vmatprep.subr.mxu0 0.0
    %189 = vmatpush1.msra.mxu0 0.0
    %190 = vmatprep.subr.mxu0 0.0
    %191 = vmatpush1.msra.mxu0 0.0
    %192 = vmatprep.subr.mxu0 0.0
    %193 = vmatpush1.msra.mxu0 0.0
    %194 = vmatprep.mubr.f32.mxu0 0.0
    %195 = vmatmul.mubr.f32.gmra.mrb[0].mxu0 %v118
    %v196 = vpop.f32.mrb[0].mxu0
    %v197 = vadd.f32 %v122, %v196
    %v198 = vpop.f32.mrb[0].mxu0
    %v199 = vadd.f32 %v123, %v198
    %200 = vmatprep.mubr.f32.mxu0 0.0
    %201 = vmatmul.mubr.f32.gmra.mrb[0].mxu0 %v119
    %v202 = vpop.f32.mrb[0].mxu0
    %v203 = vadd.f32 %v124, %v202
    %v204 = vpop.f32.mrb[0].mxu0
    %v205 = vadd.f32 %v125, %v204
    %206 = vmatprep.mubr.f32.mxu0 0.0
    %207 = vmatmul.mubr.f32.gmra.mrb[0].mxu0 %v120
    %v208 = vpop.f32.mrb[0].mxu0
    %v209 = vadd.f32 %v126, %v208
    %v210 = vpop.f32.mrb[0].mxu0
    %v211 = vadd.f32 %v127, %v210
    %212 = vmatprep.mubr.f32.mxu0 0.0
    %213 = vmatmul.mubr.f32.gmra.mrb[0].mxu0 %v121
    %v214 = vpop.f32.mrb[0].mxu0
    %v215 = vadd.f32 %v128, %v214
    %v216 = vpop.f32.mrb[0].mxu0
    %v217 = vadd.f32 %v129, %v216
    %218 = vdwg.mxu0
    %v219 = vadd.f32 %v197, %v111
    %v220 = vadd.f32 %v199, %v115
    %v221 = vadd.f32 %v203, %v111
    %v222 = vadd.f32 %v205, %v115
    %v223 = vadd.f32 %v209, %v111
    %v224 = vadd.f32 %v211, %v115
    %v225 = vadd.f32 %v215, %v111
    %v226 = vadd.f32 %v217, %v115
    %v227 = vmax.f32 %v219, %v220
    %228 = vmax.xlane.f32.xlu0 %v227
    %v229 = vpop.xlane.xlu0 %228
    %v230 = vmax.f32 %v221, %v222
    %231 = vmax.xlane.f32.xlu0 %v230
    %v232 = vpop.xlane.xlu0 %231
    %v233 = vmax.f32 %v223, %v224
    %234 = vmax.xlane.f32.xlu0 %v233
    %v235 = vpop.xlane.xlu0 %234
    %v236 = vmax.f32 %v225, %v226
    %237 = vmax.xlane.f32.xlu0 %v236
    %v238 = vpop.xlane.xlu0 %237
    %v239 = vsub.f32 %v219, %v229
    %v240 = vsub.f32 %v220, %v229
    %v241 = vsub.f32 %v221, %v232
    %v242 = vsub.f32 %v222, %v232
    %v243 = vsub.f32 %v223, %v235
    %v244 = vsub.f32 %v224, %v235
    %v245 = vsub.f32 %v225, %v238
    %v246 = vsub.f32 %v226, %v238
    %v247 = vmul.f32 %v239, 1.442695
    %v248 = vpow.pop %v247
    %v249 = vmul.f32 %v240, 1.442695
    %v250 = vpow.pop %v249
    %v251 = vmul.f32 %v241, 1.442695
    %v252 = vpow.pop %v251
    %v253 = vmul.f32 %v242, 1.442695
    %v254 = vpow.pop %v253
    %v255 = vmul.f32 %v243, 1.442695
    %v256 = vpow.pop %v255
    %v257 = vmul.f32 %v244, 1.442695
    %v258 = vpow.pop %v257
    %v259 = vmul.f32 %v245, 1.442695
    %v260 = vpow.pop %v259
    %v261 = vmul.f32 %v246, 1.442695
    %v262 = vpow.pop %v261
    %v263 = vadd.f32 %v248, %v250
    %264 = vadd.xlane.f32.xlu0 %v263
    %v265 = vpop.xlane.xlu0 %264
    %v266 = vadd.f32 %v252, %v254
    %267 = vadd.xlane.f32.xlu0 %v266
    %v268 = vpop.xlane.xlu0 %267
    %v269 = vadd.f32 %v256, %v258
    %270 = vadd.xlane.f32.xlu0 %v269
    %v271 = vpop.xlane.xlu0 %270
    %v272 = vadd.f32 %v260, %v262
    %273 = vadd.xlane.f32.xlu0 %v272
    %v274 = vpop.xlane.xlu0 %273
    %v275 = vlog2.pop %v265
    %v276 = vmul.f32 %v275, 0.6931472
    %v277 = vlog2.pop %v268
    %v278 = vmul.f32 %v277, 0.6931472
    %v279 = vlog2.pop %v271
    %v280 = vmul.f32 %v279, 0.6931472
    %v281 = vlog2.pop %v274
    %v282 = vmul.f32 %v281, 0.6931472
    %v283 = vsub.f32 %v239, %v276
    %v284 = vsub.f32 %v241, %v278
    %v285 = vsub.f32 %v243, %v280
    %v286 = vsub.f32 %v245, %v282
    %287 = vst [vmem:[#allocation9] sm:$0xff] %v283
    %288 = vst [vmem:[#allocation9 + $0x8] sm:$0xff] %v284
    %289 = vst [vmem:[#allocation9 + $0x10] sm:$0xff] %v285
    %290 = vst [vmem:[#allocation9 + $0x18] sm:$0xff] %v286
    %291 = vst [vmem:[#allocation2] sm:$0xff] %v199
    %292 = vst [vmem:[#allocation2 + $0x8] sm:$0xff] %v205
    %293 = vst [vmem:[#allocation2 + $0x10] sm:$0xff] %v211
    %294 = vst [vmem:[#allocation2 + $0x18] sm:$0xff] %v217
    %v295 = vld [vmem:[#allocation2] sm:$0xff]
    %v296 = vld [vmem:[#allocation2 + $0x8] sm:$0xff]
    %v297 = vld [vmem:[#allocation2 + $0x10] sm:$0xff]
    %v298 = vld [vmem:[#allocation2 + $0x18] sm:$0xff]
    %s299 = scalar_lea.vmem [#allocation3], 64
    %v300 = vld [vmem:[%s299] sm:$0xff]
    %v301 = vld [vmem:[%s299 + $0x8] sm:$0xff]
    %v302 = vld [vmem:[%s299 + $0x10] sm:$0xff]
    %v303 = vld [vmem:[%s299 + $0x18] sm:$0xff]
    %v304 = vld [vmem:[%s299 + $0x20] sm:$0xff]
    %v305 = vld [vmem:[%s299 + $0x28] sm:$0xff]
    %v306 = vld [vmem:[%s299 + $0x30] sm:$0xff]
    %v307 = vld [vmem:[%s299 + $0x38] sm:$0xff]
    %308 = vmatprep.subr.mxu0 %v75
    %309 = vmatpush1.msra.mxu0 %v74
    %310 = vmatprep.subr.mxu0 %v77
    %311 = vmatpush1.msra.mxu0 %v76
    %312 = vmatprep.subr.mxu0 %v79
    %313 = vmatpush1.msra.mxu0 %v78
    %314 = vmatprep.subr.mxu0 %v81
    %315 = vmatpush1.msra.mxu0 %v80
    %316 = vmatprep.subr.mxu0 %v83
    %317 = vmatpush1.msra.mxu0 %v82
    %318 = vmatprep.subr.mxu0 %v85
    %319 = vmatpush1.msra.mxu0 %v84
    %320 = vmatprep.subr.mxu0 %v87
    %321 = vmatpush1.msra.mxu0 %v86
    %322 = vmatprep.subr.mxu0 %v89
    %323 = vmatpush1.msra.mxu0 %v88
    %324 = vmatprep.subr.mxu0 %v91
    %325 = vmatpush1.msra.mxu0 %v90
    %326 = vmatprep.subr.mxu0 %v93
    %327 = vmatpush1.msra.mxu0 %v92
    %328 = vmatprep.subr.mxu0 %v95
    %329 = vmatpush1.msra.mxu0 %v94
    %330 = vmatprep.subr.mxu0 %v97
    %331 = vmatpush1.msra.mxu0 %v96
    %332 = vmatprep.subr.mxu0 %v99
    %333 = vmatpush1.msra.mxu0 %v98
    %334 = vmatprep.subr.mxu0 %v101
    %335 = vmatpush1.msra.mxu0 %v100
    %336 = vmatprep.subr.mxu0 %v103
    %337 = vmatpush1.msra.mxu0 %v102
    %338 = vmatprep.subr.mxu0 %v105
    %339 = vmatpush1.msra.mxu0 %v104
    %340 = vmatprep.subr.mxu0 0.0
    %341 = vmatpush1.msra.mxu0 0.0
    %342 = vmatprep.subr.mxu0 0.0
    %343 = vmatpush1.msra.mxu0 0.0
    %344 = vmatprep.subr.mxu0 0.0
    %345 = vmatpush1.msra.mxu0 0.0
    %346 = vmatprep.subr.mxu0 0.0
    %347 = vmatpush1.msra.mxu0 0.0
    %348 = vmatprep.subr.mxu0 0.0
    %349 = vmatpush1.msra.mxu0 0.0
    %350 = vmatprep.subr.mxu0 0.0
    %351 = vmatpush1.msra.mxu0 0.0
    %352 = vmatprep.subr.mxu0 0.0
    %353 = vmatpush1.msra.mxu0 0.0
    %354 = vmatprep.subr.mxu0 0.0
    %355 = vmatpush1.msra.mxu0 0.0
    %356 = vmatprep.subr.mxu0 0.0
    %357 = vmatpush1.msra.mxu0 0.0
    %358 = vmatprep.subr.mxu0 0.0
    %359 = vmatpush1.msra.mxu0 0.0
    %360 = vmatprep.subr.mxu0 0.0
    %361 = vmatpush1.msra.mxu0 0.0
    %362 = vmatprep.subr.mxu0 0.0
    %363 = vmatpush1.msra.mxu0 0.0
    %364 = vmatprep.subr.mxu0 0.0
    %365 = vmatpush1.msra.mxu0 0.0
    %366 = vmatprep.subr.mxu0 0.0
    %367 = vmatpush1.msra.mxu0 0.0
    %368 = vmatprep.subr.mxu0 0.0
    %369 = vmatpush1.msra.mxu0 0.0
    %370 = vmatprep.subr.mxu0 0.0
    %371 = vmatpush1.msra.mxu0 0.0
    %372 = vmatprep.mubr.f32.mxu0 0.0
    %373 = vmatmul.mubr.f32.gmra.mrb[0].mxu0 %v295
    %v374 = vpop.f32.mrb[0].mxu0
    %v375 = vadd.f32 %v300, %v374
    %v376 = vpop.f32.mrb[0].mxu0
    %v377 = vadd.f32 %v301, %v376
    %378 = vmatprep.mubr.f32.mxu0 0.0
    %379 = vmatmul.mubr.f32.gmra.mrb[0].mxu0 %v296
    %v380 = vpop.f32.mrb[0].mxu0
    %v381 = vadd.f32 %v302, %v380
    %v382 = vpop.f32.mrb[0].mxu0
    %v383 = vadd.f32 %v303, %v382
    %384 = vmatprep.mubr.f32.mxu0 0.0
    %385 = vmatmul.mubr.f32.gmra.mrb[0].mxu0 %v297
    %v386 = vpop.f32.mrb[0].mxu0
    %v387 = vadd.f32 %v304, %v386
    %v388 = vpop.f32.mrb[0].mxu0
    %v389 = vadd.f32 %v305, %v388
    %390 = vmatprep.mubr.f32.mxu0 0.0
    %391 = vmatmul.mubr.f32.gmra.mrb[0].mxu0 %v298
    %v392 = vpop.f32.mrb[0].mxu0
    %v393 = vadd.f32 %v306, %v392
    %v394 = vpop.f32.mrb[0].mxu0
    %v395 = vadd.f32 %v307, %v394
    %396 = vdwg.mxu0
    %v397 = vadd.f32 %v375, %v111
    %v398 = vadd.f32 %v377, %v115
    %v399 = vadd.f32 %v381, %v111
    %v400 = vadd.f32 %v383, %v115
    %v401 = vadd.f32 %v387, %v111
    %v402 = vadd.f32 %v389, %v115
    %v403 = vadd.f32 %v393, %v111
    %v404 = vadd.f32 %v395, %v115
    %v405 = vmax.f32 %v397, %v398
    %406 = vmax.xlane.f32.xlu0 %v405
    %v407 = vpop.xlane.xlu0 %406
    %v408 = vmax.f32 %v399, %v400
    %409 = vmax.xlane.f32.xlu0 %v408
    %v410 = vpop.xlane.xlu0 %409
    %v411 = vmax.f32 %v401, %v402
    %412 = vmax.xlane.f32.xlu0 %v411
    %v413 = vpop.xlane.xlu0 %412
    %v414 = vmax.f32 %v403, %v404
    %415 = vmax.xlane.f32.xlu0 %v414
    %v416 = vpop.xlane.xlu0 %415
    %v417 = vsub.f32 %v397, %v407
    %v418 = vsub.f32 %v398, %v407
    %v419 = vsub.f32 %v399, %v410
    %v420 = vsub.f32 %v400, %v410
    %v421 = vsub.f32 %v401, %v413
    %v422 = vsub.f32 %v402, %v413
    %v423 = vsub.f32 %v403, %v416
    %v424 = vsub.f32 %v404, %v416
    %v425 = vmul.f32 %v417, 1.442695
    %v426 = vpow.pop %v425
    %v427 = vmul.f32 %v418, 1.442695
    %v428 = vpow.pop %v427
    %v429 = vmul.f32 %v419, 1.442695
    %v430 = vpow.pop %v429
    %v431 = vmul.f32 %v420, 1.442695
    %v432 = vpow.pop %v431
    %v433 = vmul.f32 %v421, 1.442695
    %v434 = vpow.pop %v433
    %v435 = vmul.f32 %v422, 1.442695
    %v436 = vpow.pop %v435
    %v437 = vmul.f32 %v423, 1.442695
    %v438 = vpow.pop %v437
    %v439 = vmul.f32 %v424, 1.442695
    %v440 = vpow.pop %v439
    %v441 = vadd.f32 %v426, %v428
    %442 = vadd.xlane.f32.xlu0 %v441
    %v443 = vpop.xlane.xlu0 %442
    %v444 = vadd.f32 %v430, %v432
    %445 = vadd.xlane.f32.xlu0 %v444
    %v446 = vpop.xlane.xlu0 %445
    %v447 = vadd.f32 %v434, %v436
    %448 = vadd.xlane.f32.xlu0 %v447
    %v449 = vpop.xlane.xlu0 %448
    %v450 = vadd.f32 %v438, %v440
    %451 = vadd.xlane.f32.xlu0 %v450
    %v452 = vpop.xlane.xlu0 %451
    %v453 = vlog2.pop %v443
    %v454 = vmul.f32 %v453, 0.6931472
    %v455 = vlog2.pop %v446
    %v456 = vmul.f32 %v455, 0.6931472
    %v457 = vlog2.pop %v449
    %v458 = vmul.f32 %v457, 0.6931472
    %v459 = vlog2.pop %v452
    %v460 = vmul.f32 %v459, 0.6931472
    %v461 = vsub.f32 %v417, %v454
    %v462 = vsub.f32 %v419, %v456
    %v463 = vsub.f32 %v421, %v458
    %v464 = vsub.f32 %v423, %v460
    %s465 = scalar_lea.vmem [#allocation9], 32
    %466 = vst [vmem:[%s465] sm:$0xff] %v461
    %467 = vst [vmem:[%s465 + $0x8] sm:$0xff] %v462
    %468 = vst [vmem:[%s465 + $0x10] sm:$0xff] %v463
    %469 = vst [vmem:[%s465 + $0x18] sm:$0xff] %v464
    %470 = vst [vmem:[#allocation2] sm:$0xff] %v377
    %471 = vst [vmem:[#allocation2 + $0x8] sm:$0xff] %v383
    %472 = vst [vmem:[#allocation2 + $0x10] sm:$0xff] %v389
    %473 = vst [vmem:[#allocation2 + $0x18] sm:$0xff] %v395
    %v474 = vld [vmem:[#allocation2] sm:$0xff]
    %v475 = vld [vmem:[#allocation2 + $0x8] sm:$0xff]
    %v476 = vld [vmem:[#allocation2 + $0x10] sm:$0xff]
    %v477 = vld [vmem:[#allocation2 + $0x18] sm:$0xff]
    %s478 = scalar_lea.vmem [#allocation3], 128
    %v479 = vld [vmem:[%s478] sm:$0xff]
    %v480 = vld [vmem:[%s478 + $0x8] sm:$0xff]
    %v481 = vld [vmem:[%s478 + $0x10] sm:$0xff]
    %v482 = vld [vmem:[%s478 + $0x18] sm:$0xff]
    %v483 = vld [vmem:[%s478 + $0x20] sm:$0xff]
    %v484 = vld [vmem:[%s478 + $0x28] sm:$0xff]
    %v485 = vld [vmem:[%s478 + $0x30] sm:$0xff]
    %v486 = vld [vmem:[%s478 + $0x38] sm:$0xff]
    %487 = vmatprep.subr.mxu0 %v75
    %488 = vmatpush1.msra.mxu0 %v74
    %489 = vmatprep.subr.mxu0 %v77
    %490 = vmatpush1.msra.mxu0 %v76
    %491 = vmatprep.subr.mxu0 %v79
    %492 = vmatpush1.msra.mxu0 %v78
    %493 = vmatprep.subr.mxu0 %v81
    %494 = vmatpush1.msra.mxu0 %v80
    %495 = vmatprep.subr.mxu0 %v83
    %496 = vmatpush1.msra.mxu0 %v82
    %497 = vmatprep.subr.mxu0 %v85
    %498 = vmatpush1.msra.mxu0 %v84
    %499 = vmatprep.subr.mxu0 %v87
    %500 = vmatpush1.msra.mxu0 %v86
    %501 = vmatprep.subr.mxu0 %v89
    %502 = vmatpush1.msra.mxu0 %v88
    %503 = vmatprep.subr.mxu0 %v91
    %504 = vmatpush1.msra.mxu0 %v90
    %505 = vmatprep.subr.mxu0 %v93
    %506 = vmatpush1.msra.mxu0 %v92
    %507 = vmatprep.subr.mxu0 %v95
    %508 = vmatpush1.msra.mxu0 %v94
    %509 = vmatprep.subr.mxu0 %v97
    %510 = vmatpush1.msra.mxu0 %v96
    %511 = vmatprep.subr.mxu0 %v99
    %512 = vmatpush1.msra.mxu0 %v98
    %513 = vmatprep.subr.mxu0 %v101
    %514 = vmatpush1.msra.mxu0 %v100
    %515 = vmatprep.subr.mxu0 %v103
    %516 = vmatpush1.msra.mxu0 %v102
    %517 = vmatprep.subr.mxu0 %v105
    %518 = vmatpush1.msra.mxu0 %v104
    %519 = vmatprep.subr.mxu0 0.0
    %520 = vmatpush1.msra.mxu0 0.0
    %521 = vmatprep.subr.mxu0 0.0
    %522 = vmatpush1.msra.mxu0 0.0
    %523 = vmatprep.subr.mxu0 0.0
    %524 = vmatpush1.msra.mxu0 0.0
    %525 = vmatprep.subr.mxu0 0.0
    %526 = vmatpush1.msra.mxu0 0.0
    %527 = vmatprep.subr.mxu0 0.0
    %528 = vmatpush1.msra.mxu0 0.0
    %529 = vmatprep.subr.mxu0 0.0
    %530 = vmatpush1.msra.mxu0 0.0
    %531 = vmatprep.subr.mxu0 0.0
    %532 = vmatpush1.msra.mxu0 0.0
    %533 = vmatprep.subr.mxu0 0.0
    %534 = vmatpush1.msra.mxu0 0.0
    %535 = vmatprep.subr.mxu0 0.0
    %536 = vmatpush1.msra.mxu0 0.0
    %537 = vmatprep.subr.mxu0 0.0
    %538 = vmatpush1.msra.mxu0 0.0
    %539 = vmatprep.subr.mxu0 0.0
    %540 = vmatpush1.msra.mxu0 0.0
    %541 = vmatprep.subr.mxu0 0.0
    %542 = vmatpush1.msra.mxu0 0.0
    %543 = vmatprep.subr.mxu0 0.0
    %544 = vmatpush1.msra.mxu0 0.0
    %545 = vmatprep.subr.mxu0 0.0
    %546 = vmatpush1.msra.mxu0 0.0
    %547 = vmatprep.subr.mxu0 0.0
    %548 = vmatpush1.msra.mxu0 0.0
    %549 = vmatprep.subr.mxu0 0.0
    %550 = vmatpush1.msra.mxu0 0.0
    %551 = vmatprep.mubr.f32.mxu0 0.0
    %552 = vmatmul.mubr.f32.gmra.mrb[0].mxu0 %v474
    %v553 = vpop.f32.mrb[0].mxu0
    %v554 = vadd.f32 %v479, %v553
    %v555 = vpop.f32.mrb[0].mxu0
    %v556 = vadd.f32 %v480, %v555
    %557 = vmatprep.mubr.f32.mxu0 0.0
    %558 = vmatmul.mubr.f32.gmra.mrb[0].mxu0 %v475
    %v559 = vpop.f32.mrb[0].mxu0
    %v560 = vadd.f32 %v481, %v559
    %v561 = vpop.f32.mrb[0].mxu0
    %v562 = vadd.f32 %v482, %v561
    %563 = vmatprep.mubr.f32.mxu0 0.0
    %564 = vmatmul.mubr.f32.gmra.mrb[0].mxu0 %v476
    %v565 = vpop.f32.mrb[0].mxu0
    %v566 = vadd.f32 %v483, %v565
    %v567 = vpop.f32.mrb[0].mxu0
    %v568 = vadd.f32 %v484, %v567
    %569 = vmatprep.mubr.f32.mxu0 0.0
    %570 = vmatmul.mubr.f32.gmra.mrb[0].mxu0 %v477
    %v571 = vpop.f32.mrb[0].mxu0
    %v572 = vadd.f32 %v485, %v571
    %v573 = vpop.f32.mrb[0].mxu0
    %v574 = vadd.f32 %v486, %v573
    %575 = vdwg.mxu0
    %v576 = vadd.f32 %v554, %v111
    %v577 = vadd.f32 %v556, %v115
    %v578 = vadd.f32 %v560, %v111
    %v579 = vadd.f32 %v562, %v115
    %v580 = vadd.f32 %v566, %v111
    %v581 = vadd.f32 %v568, %v115
    %v582 = vadd.f32 %v572, %v111
    %v583 = vadd.f32 %v574, %v115
    %v584 = vmax.f32 %v576, %v577
    %585 = vmax.xlane.f32.xlu0 %v584
    %v586 = vpop.xlane.xlu0 %585
    %v587 = vmax.f32 %v578, %v579
    %588 = vmax.xlane.f32.xlu0 %v587
    %v589 = vpop.xlane.xlu0 %588
    %v590 = vmax.f32 %v580, %v581
    %591 = vmax.xlane.f32.xlu0 %v590
    %v592 = vpop.xlane.xlu0 %591
    %v593 = vmax.f32 %v582, %v583
    %594 = vmax.xlane.f32.xlu0 %v593
    %v595 = vpop.xlane.xlu0 %594
    %v596 = vsub.f32 %v576, %v586
    %v597 = vsub.f32 %v577, %v586
    %v598 = vsub.f32 %v578, %v589
    %v599 = vsub.f32 %v579, %v589
    %v600 = vsub.f32 %v580, %v592
    %v601 = vsub.f32 %v581, %v592
    %v602 = vsub.f32 %v582, %v595
    %v603 = vsub.f32 %v583, %v595
    %v604 = vmul.f32 %v596, 1.442695
    %v605 = vpow.pop %v604
    %v606 = vmul.f32 %v597, 1.442695
    %v607 = vpow.pop %v606
    %v608 = vmul.f32 %v598, 1.442695
    %v609 = vpow.pop %v608
    %v610 = vmul.f32 %v599, 1.442695
    %v611 = vpow.pop %v610
    %v612 = vmul.f32 %v600, 1.442695
    %v613 = vpow.pop %v612
    %v614 = vmul.f32 %v601, 1.442695
    %v615 = vpow.pop %v614
    %v616 = vmul.f32 %v602, 1.442695
    %v617 = vpow.pop %v616
    %v618 = vmul.f32 %v603, 1.442695
    %v619 = vpow.pop %v618
    %v620 = vadd.f32 %v605, %v607
    %621 = vadd.xlane.f32.xlu0 %v620
    %v622 = vpop.xlane.xlu0 %621
    %v623 = vadd.f32 %v609, %v611
    %624 = vadd.xlane.f32.xlu0 %v623
    %v625 = vpop.xlane.xlu0 %624
    %v626 = vadd.f32 %v613, %v615
    %627 = vadd.xlane.f32.xlu0 %v626
    %v628 = vpop.xlane.xlu0 %627
    %v629 = vadd.f32 %v617, %v619
    %630 = vadd.xlane.f32.xlu0 %v629
    %v631 = vpop.xlane.xlu0 %630
    %v632 = vlog2.pop %v622
    %v633 = vmul.f32 %v632, 0.6931472
    %v634 = vlog2.pop %v625
    %v635 = vmul.f32 %v634, 0.6931472
    %v636 = vlog2.pop %v628
    %v637 = vmul.f32 %v636, 0.6931472
    %v638 = vlog2.pop %v631
    %v639 = vmul.f32 %v638, 0.6931472
    %v640 = vsub.f32 %v596, %v633
    %v641 = vsub.f32 %v598, %v635
    %v642 = vsub.f32 %v600, %v637
    %v643 = vsub.f32 %v602, %v639
    %s644 = scalar_lea.vmem [#allocation9], 64
    %645 = vst [vmem:[%s644] sm:$0xff] %v640
    %646 = vst [vmem:[%s644 + $0x8] sm:$0xff] %v641
    %647 = vst [vmem:[%s644 + $0x10] sm:$0xff] %v642
    %648 = vst [vmem:[%s644 + $0x18] sm:$0xff] %v643
    %649 = vst [vmem:[#allocation2] sm:$0xff] %v556
    %650 = vst [vmem:[#allocation2 + $0x8] sm:$0xff] %v562
    %651 = vst [vmem:[#allocation2 + $0x10] sm:$0xff] %v568
    %652 = vst [vmem:[#allocation2 + $0x18] sm:$0xff] %v574
    %v653 = vld [vmem:[#allocation2] sm:$0xff]
    %v654 = vld [vmem:[#allocation2 + $0x8] sm:$0xff]
    %v655 = vld [vmem:[#allocation2 + $0x10] sm:$0xff]
    %v656 = vld [vmem:[#allocation2 + $0x18] sm:$0xff]
    %s657 = scalar_lea.vmem [#allocation3], 192
    %v658 = vld [vmem:[%s657] sm:$0xff]
    %v659 = vld [vmem:[%s657 + $0x8] sm:$0xff]
    %v660 = vld [vmem:[%s657 + $0x10] sm:$0xff]
    %v661 = vld [vmem:[%s657 + $0x18] sm:$0xff]
    %v662 = vld [vmem:[%s657 + $0x20] sm:$0xff]
    %v663 = vld [vmem:[%s657 + $0x28] sm:$0xff]
    %v664 = vld [vmem:[%s657 + $0x30] sm:$0xff]
    %v665 = vld [vmem:[%s657 + $0x38] sm:$0xff]
    %666 = vmatprep.subr.mxu0 %v75
    %667 = vmatpush1.msra.mxu0 %v74
    %668 = vmatprep.subr.mxu0 %v77
    %669 = vmatpush1.msra.mxu0 %v76
    %670 = vmatprep.subr.mxu0 %v79
    %671 = vmatpush1.msra.mxu0 %v78
    %672 = vmatprep.subr.mxu0 %v81
    %673 = vmatpush1.msra.mxu0 %v80
    %674 = vmatprep.subr.mxu0 %v83
    %675 = vmatpush1.msra.mxu0 %v82
    %676 = vmatprep.subr.mxu0 %v85
    %677 = vmatpush1.msra.mxu0 %v84
    %678 = vmatprep.subr.mxu0 %v87
    %679 = vmatpush1.msra.mxu0 %v86
    %680 = vmatprep.subr.mxu0 %v89
    %681 = vmatpush1.msra.mxu0 %v88
    %682 = vmatprep.subr.mxu0 %v91
    %683 = vmatpush1.msra.mxu0 %v90
    %684 = vmatprep.subr.mxu0 %v93
    %685 = vmatpush1.msra.mxu0 %v92
    %686 = vmatprep.subr.mxu0 %v95
    %687 = vmatpush1.msra.mxu0 %v94
    %688 = vmatprep.subr.mxu0 %v97
    %689 = vmatpush1.msra.mxu0 %v96
    %690 = vmatprep.subr.mxu0 %v99
    %691 = vmatpush1.msra.mxu0 %v98
    %692 = vmatprep.subr.mxu0 %v101
    %693 = vmatpush1.msra.mxu0 %v100
    %694 = vmatprep.subr.mxu0 %v103
    %695 = vmatpush1.msra.mxu0 %v102
    %696 = vmatprep.subr.mxu0 %v105
    %697 = vmatpush1.msra.mxu0 %v104
    %698 = vmatprep.subr.mxu0 0.0
    %699 = vmatpush1.msra.mxu0 0.0
    %700 = vmatprep.subr.mxu0 0.0
    %701 = vmatpush1.msra.mxu0 0.0
    %702 = vmatprep.subr.mxu0 0.0
    %703 = vmatpush1.msra.mxu0 0.0
    %704 = vmatprep.subr.mxu0 0.0
    %705 = vmatpush1.msra.mxu0 0.0
    %706 = vmatprep.subr.mxu0 0.0
    %707 = vmatpush1.msra.mxu0 0.0
    %708 = vmatprep.subr.mxu0 0.0
    %709 = vmatpush1.msra.mxu0 0.0
    %710 = vmatprep.subr.mxu0 0.0
    %711 = vmatpush1.msra.mxu0 0.0
    %712 = vmatprep.subr.mxu0 0.0
    %713 = vmatpush1.msra.mxu0 0.0
    %714 = vmatprep.subr.mxu0 0.0
    %715 = vmatpush1.msra.mxu0 0.0
    %716 = vmatprep.subr.mxu0 0.0
    %717 = vmatpush1.msra.mxu0 0.0
    %718 = vmatprep.subr.mxu0 0.0
    %719 = vmatpush1.msra.mxu0 0.0
    %720 = vmatprep.subr.mxu0 0.0
    %721 = vmatpush1.msra.mxu0 0.0
    %722 = vmatprep.subr.mxu0 0.0
    %723 = vmatpush1.msra.mxu0 0.0
    %724 = vmatprep.subr.mxu0 0.0
    %725 = vmatpush1.msra.mxu0 0.0
    %726 = vmatprep.subr.mxu0 0.0
    %727 = vmatpush1.msra.mxu0 0.0
    %728 = vmatprep.subr.mxu0 0.0
    %729 = vmatpush1.msra.mxu0 0.0
    %730 = vmatprep.mubr.f32.mxu0 0.0
    %731 = vmatmul.mubr.f32.gmra.mrb[0].mxu0 %v653
    %v732 = vpop.f32.mrb[0].mxu0
    %v733 = vadd.f32 %v658, %v732
    %v734 = vpop.f32.mrb[0].mxu0
    %v735 = vadd.f32 %v659, %v734
    %736 = vmatprep.mubr.f32.mxu0 0.0
    %737 = vmatmul.mubr.f32.gmra.mrb[0].mxu0 %v654
    %v738 = vpop.f32.mrb[0].mxu0
    %v739 = vadd.f32 %v660, %v738
    %v740 = vpop.f32.mrb[0].mxu0
    %v741 = vadd.f32 %v661, %v740
    %742 = vmatprep.mubr.f32.mxu0 0.0
    %743 = vmatmul.mubr.f32.gmra.mrb[0].mxu0 %v655
    %v744 = vpop.f32.mrb[0].mxu0
    %v745 = vadd.f32 %v662, %v744
    %v746 = vpop.f32.mrb[0].mxu0
    %v747 = vadd.f32 %v663, %v746
    %748 = vmatprep.mubr.f32.mxu0 0.0
    %749 = vmatmul.mubr.f32.gmra.mrb[0].mxu0 %v656
    %v750 = vpop.f32.mrb[0].mxu0
    %v751 = vadd.f32 %v664, %v750
    %v752 = vpop.f32.mrb[0].mxu0
    %v753 = vadd.f32 %v665, %v752
    %754 = vdwg.mxu0
    %v755 = vadd.f32 %v733, %v111
    %v756 = vadd.f32 %v735, %v115
    %v757 = vadd.f32 %v739, %v111
    %v758 = vadd.f32 %v741, %v115
    %v759 = vadd.f32 %v745, %v111
    %v760 = vadd.f32 %v747, %v115
    %v761 = vadd.f32 %v751, %v111
    %v762 = vadd.f32 %v753, %v115
    %v763 = vmax.f32 %v755, %v756
    %764 = vmax.xlane.f32.xlu0 %v763
    %v765 = vpop.xlane.xlu0 %764
    %v766 = vmax.f32 %v757, %v758
    %767 = vmax.xlane.f32.xlu0 %v766
    %v768 = vpop.xlane.xlu0 %767
    %v769 = vmax.f32 %v759, %v760
    %770 = vmax.xlane.f32.xlu0 %v769
    %v771 = vpop.xlane.xlu0 %770
    %v772 = vmax.f32 %v761, %v762
    %773 = vmax.xlane.f32.xlu0 %v772
    %v774 = vpop.xlane.xlu0 %773
    %v775 = vsub.f32 %v755, %v765
    %v776 = vsub.f32 %v756, %v765
    %v777 = vsub.f32 %v757, %v768
    %v778 = vsub.f32 %v758, %v768
    %v779 = vsub.f32 %v759, %v771
    %v780 = vsub.f32 %v760, %v771
    %v781 = vsub.f32 %v761, %v774
    %v782 = vsub.f32 %v762, %v774
    %v783 = vmul.f32 %v775, 1.442695
    %v784 = vpow.pop %v783
    %v785 = vmul.f32 %v776, 1.442695
    %v786 = vpow.pop %v785
    %v787 = vmul.f32 %v777, 1.442695
    %v788 = vpow.pop %v787
    %v789 = vmul.f32 %v778, 1.442695
    %v790 = vpow.pop %v789
    %v791 = vmul.f32 %v779, 1.442695
    %v792 = vpow.pop %v791
    %v793 = vmul.f32 %v780, 1.442695
    %v794 = vpow.pop %v793
    %v795 = vmul.f32 %v781, 1.442695
    %v796 = vpow.pop %v795
    %v797 = vmul.f32 %v782, 1.442695
    %v798 = vpow.pop %v797
    %v799 = vadd.f32 %v784, %v786
    %800 = vadd.xlane.f32.xlu0 %v799
    %v801 = vpop.xlane.xlu0 %800
    %v802 = vadd.f32 %v788, %v790
    %803 = vadd.xlane.f32.xlu0 %v802
    %v804 = vpop.xlane.xlu0 %803
    %v805 = vadd.f32 %v792, %v794
    %806 = vadd.xlane.f32.xlu0 %v805
    %v807 = vpop.xlane.xlu0 %806
    %v808 = vadd.f32 %v796, %v798
    %809 = vadd.xlane.f32.xlu0 %v808
    %v810 = vpop.xlane.xlu0 %809
    %v811 = vlog2.pop %v801
    %v812 = vmul.f32 %v811, 0.6931472
    %v813 = vlog2.pop %v804
    %v814 = vmul.f32 %v813, 0.6931472
    %v815 = vlog2.pop %v807
    %v816 = vmul.f32 %v815, 0.6931472
    %v817 = vlog2.pop %v810
    %v818 = vmul.f32 %v817, 0.6931472
    %v819 = vsub.f32 %v775, %v812
    %v820 = vsub.f32 %v777, %v814
    %v821 = vsub.f32 %v779, %v816
    %v822 = vsub.f32 %v781, %v818
    %s823 = scalar_lea.vmem [#allocation9], 96
    %824 = vst [vmem:[%s823] sm:$0xff] %v819
    %825 = vst [vmem:[%s823 + $0x8] sm:$0xff] %v820
    %826 = vst [vmem:[%s823 + $0x10] sm:$0xff] %v821
    %827 = vst [vmem:[%s823 + $0x18] sm:$0xff] %v822
    %828 = vst [vmem:[#allocation2] sm:$0xff] %v735
    %829 = vst [vmem:[#allocation2 + $0x8] sm:$0xff] %v741
    %830 = vst [vmem:[#allocation2 + $0x10] sm:$0xff] %v747
    %831 = vst [vmem:[#allocation2 + $0x18] sm:$0xff] %v753
    %v832 = vld [vmem:[#allocation2] sm:$0xff]
    %v833 = vld [vmem:[#allocation2 + $0x8] sm:$0xff]
    %v834 = vld [vmem:[#allocation2 + $0x10] sm:$0xff]
    %v835 = vld [vmem:[#allocation2 + $0x18] sm:$0xff]
    %s836 = scalar_lea.vmem [#allocation3], 256
    %v837 = vld [vmem:[%s836] sm:$0xff]
    %v838 = vld [vmem:[%s836 + $0x8] sm:$0xff]
    %v839 = vld [vmem:[%s836 + $0x10] sm:$0xff]
    %v840 = vld [vmem:[%s836 + $0x18] sm:$0xff]
    %v841 = vld [vmem:[%s836 + $0x20] sm:$0xff]
    %v842 = vld [vmem:[%s836 + $0x28] sm:$0xff]
    %v843 = vld [vmem:[%s836 + $0x30] sm:$0xff]
    %v844 = vld [vmem:[%s836 + $0x38] sm:$0xff]
    %845 = vmatprep.subr.mxu0 %v75
    %846 = vmatpush1.msra.mxu0 %v74
    %847 = vmatprep.subr.mxu0 %v77
    %848 = vmatpush1.msra.mxu0 %v76
    %849 = vmatprep.subr.mxu0 %v79
    %850 = vmatpush1.msra.mxu0 %v78
    %851 = vmatprep.subr.mxu0 %v81
    %852 = vmatpush1.msra.mxu0 %v80
    %853 = vmatprep.subr.mxu0 %v83
    %854 = vmatpush1.msra.mxu0 %v82
    %855 = vmatprep.subr.mxu0 %v85
    %856 = vmatpush1.msra.mxu0 %v84
    %857 = vmatprep.subr.mxu0 %v87
    %858 = vmatpush1.msra.mxu0 %v86
    %859 = vmatprep.subr.mxu0 %v89
    %860 = vmatpush1.msra.mxu0 %v88
    %861 = vmatprep.subr.mxu0 %v91
    %862 = vmatpush1.msra.mxu0 %v90
    %863 = vmatprep.subr.mxu0 %v93
    %864 = vmatpush1.msra.mxu0 %v92
    %865 = vmatprep.subr.mxu0 %v95
    %866 = vmatpush1.msra.mxu0 %v94
    %867 = vmatprep.subr.mxu0 %v97
    %868 = vmatpush1.msra.mxu0 %v96
    %869 = vmatprep.subr.mxu0 %v99
    %870 = vmatpush1.msra.mxu0 %v98
    %871 = vmatprep.subr.mxu0 %v101
    %872 = vmatpush1.msra.mxu0 %v100
    %873 = vmatprep.subr.mxu0 %v103
    %874 = vmatpush1.msra.mxu0 %v102
    %875 = vmatprep.subr.mxu0 %v105
    %876 = vmatpush1.msra.mxu0 %v104
    %877 = vmatprep.subr.mxu0 0.0
    %878 = vmatpush1.msra.mxu0 0.0
    %879 = vmatprep.subr.mxu0 0.0
    %880 = vmatpush1.msra.mxu0 0.0
    %881 = vmatprep.subr.mxu0 0.0
    %882 = vmatpush1.msra.mxu0 0.0
    %883 = vmatprep.subr.mxu0 0.0
    %884 = vmatpush1.msra.mxu0 0.0
    %885 = vmatprep.subr.mxu0 0.0
    %886 = vmatpush1.msra.mxu0 0.0
    %887 = vmatprep.subr.mxu0 0.0
    %888 = vmatpush1.msra.mxu0 0.0
    %889 = vmatprep.subr.mxu0 0.0
    %890 = vmatpush1.msra.mxu0 0.0
    %891 = vmatprep.subr.mxu0 0.0
    %892 = vmatpush1.msra.mxu0 0.0
    %893 = vmatprep.subr.mxu0 0.0
    %894 = vmatpush1.msra.mxu0 0.0
    %895 = vmatprep.subr.mxu0 0.0
    %896 = vmatpush1.msra.mxu0 0.0
    %897 = vmatprep.subr.mxu0 0.0
    %898 = vmatpush1.msra.mxu0 0.0
    %899 = vmatprep.subr.mxu0 0.0
    %900 = vmatpush1.msra.mxu0 0.0
    %901 = vmatprep.subr.mxu0 0.0
    %902 = vmatpush1.msra.mxu0 0.0
    %903 = vmatprep.subr.mxu0 0.0
    %904 = vmatpush1.msra.mxu0 0.0
    %905 = vmatprep.subr.mxu0 0.0
    %906 = vmatpush1.msra.mxu0 0.0
    %907 = vmatprep.subr.mxu0 0.0
    %908 = vmatpush1.msra.mxu0 0.0
    %909 = vmatprep.mubr.f32.mxu0 0.0
    %910 = vmatmul.mubr.f32.gmra.mrb[0].mxu0 %v832
    %v911 = vpop.f32.mrb[0].mxu0
    %v912 = vadd.f32 %v837, %v911
    %v913 = vpop.f32.mrb[0].mxu0
    %v914 = vadd.f32 %v838, %v913
    %915 = vmatprep.mubr.f32.mxu0 0.0
    %916 = vmatmul.mubr.f32.gmra.mrb[0].mxu0 %v833
    %v917 = vpop.f32.mrb[0].mxu0
    %v918 = vadd.f32 %v839, %v917
    %v919 = vpop.f32.mrb[0].mxu0
    %v920 = vadd.f32 %v840, %v919
    %921 = vmatprep.mubr.f32.mxu0 0.0
    %922 = vmatmul.mubr.f32.gmra.mrb[0].mxu0 %v834
    %v923 = vpop.f32.mrb[0].mxu0
    %v924 = vadd.f32 %v841, %v923
    %v925 = vpop.f32.mrb[0].mxu0
    %v926 = vadd.f32 %v842, %v925
    %927 = vmatprep.mubr.f32.mxu0 0.0
    %928 = vmatmul.mubr.f32.gmra.mrb[0].mxu0 %v835
    %v929 = vpop.f32.mrb[0].mxu0
    %v930 = vadd.f32 %v843, %v929
    %v931 = vpop.f32.mrb[0].mxu0
    %v932 = vadd.f32 %v844, %v931
    %933 = vdwg.mxu0
    %v934 = vadd.f32 %v912, %v111
    %v935 = vadd.f32 %v914, %v115
    %v936 = vadd.f32 %v918, %v111
    %v937 = vadd.f32 %v920, %v115
    %v938 = vadd.f32 %v924, %v111
    %v939 = vadd.f32 %v926, %v115
    %v940 = vadd.f32 %v930, %v111
    %v941 = vadd.f32 %v932, %v115
    %v942 = vmax.f32 %v934, %v935
    %943 = vmax.xlane.f32.xlu0 %v942
    %v944 = vpop.xlane.xlu0 %943
    %v945 = vmax.f32 %v936, %v937
    %946 = vmax.xlane.f32.xlu0 %v945
    %v947 = vpop.xlane.xlu0 %946
    %v948 = vmax.f32 %v938, %v939
    %949 = vmax.xlane.f32.xlu0 %v948
    %v950 = vpop.xlane.xlu0 %949
    %v951 = vmax.f32 %v940, %v941
    %952 = vmax.xlane.f32.xlu0 %v951
    %v953 = vpop.xlane.xlu0 %952
    %v954 = vsub.f32 %v934, %v944
    %v955 = vsub.f32 %v935, %v944
    %v956 = vsub.f32 %v936, %v947
    %v957 = vsub.f32 %v937, %v947
    %v958 = vsub.f32 %v938, %v950
    %v959 = vsub.f32 %v939, %v950
    %v960 = vsub.f32 %v940, %v953
    %v961 = vsub.f32 %v941, %v953
    %v962 = vmul.f32 %v954, 1.442695
    %v963 = vpow.pop %v962
    %v964 = vmul.f32 %v955, 1.442695
    %v965 = vpow.pop %v964
    %v966 = vmul.f32 %v956, 1.442695
    %v967 = vpow.pop %v966
    %v968 = vmul.f32 %v957, 1.442695
    %v969 = vpow.pop %v968
    %v970 = vmul.f32 %v958, 1.442695
    %v971 = vpow.pop %v970
    %v972 = vmul.f32 %v959, 1.442695
    %v973 = vpow.pop %v972
    %v974 = vmul.f32 %v960, 1.442695
    %v975 = vpow.pop %v974
    %v976 = vmul.f32 %v961, 1.442695
    %v977 = vpow.pop %v976
    %v978 = vadd.f32 %v963, %v965
    %979 = vadd.xlane.f32.xlu0 %v978
    %v980 = vpop.xlane.xlu0 %979
    %v981 = vadd.f32 %v967, %v969
    %982 = vadd.xlane.f32.xlu0 %v981
    %v983 = vpop.xlane.xlu0 %982
    %v984 = vadd.f32 %v971, %v973
    %985 = vadd.xlane.f32.xlu0 %v984
    %v986 = vpop.xlane.xlu0 %985
    %v987 = vadd.f32 %v975, %v977
    %988 = vadd.xlane.f32.xlu0 %v987
    %v989 = vpop.xlane.xlu0 %988
    %v990 = vlog2.pop %v980
    %v991 = vmul.f32 %v990, 0.6931472
    %v992 = vlog2.pop %v983
    %v993 = vmul.f32 %v992, 0.6931472
    %v994 = vlog2.pop %v986
    %v995 = vmul.f32 %v994, 0.6931472
    %v996 = vlog2.pop %v989
    %v997 = vmul.f32 %v996, 0.6931472
    %v998 = vsub.f32 %v954, %v991
    %v999 = vsub.f32 %v956, %v993
    %v1000 = vsub.f32 %v958, %v995
    %v1001 = vsub.f32 %v960, %v997
    %s1002 = scalar_lea.vmem [#allocation9], 128
    %1003 = vst [vmem:[%s1002] sm:$0xff] %v998
    %1004 = vst [vmem:[%s1002 + $0x8] sm:$0xff] %v999
    %1005 = vst [vmem:[%s1002 + $0x10] sm:$0xff] %v1000
    %1006 = vst [vmem:[%s1002 + $0x18] sm:$0xff] %v1001
    %1007 = vst [vmem:[#allocation2] sm:$0xff] %v914
    %1008 = vst [vmem:[#allocation2 + $0x8] sm:$0xff] %v920
    %1009 = vst [vmem:[#allocation2 + $0x10] sm:$0xff] %v926
    %1010 = vst [vmem:[#allocation2 + $0x18] sm:$0xff] %v932
    %v1011 = vld [vmem:[#allocation2] sm:$0xff]
    %v1012 = vld [vmem:[#allocation2 + $0x8] sm:$0xff]
    %v1013 = vld [vmem:[#allocation2 + $0x10] sm:$0xff]
    %v1014 = vld [vmem:[#allocation2 + $0x18] sm:$0xff]
    %s1015 = scalar_lea.vmem [#allocation3], 320
    %v1016 = vld [vmem:[%s1015] sm:$0xff]
    %v1017 = vld [vmem:[%s1015 + $0x8] sm:$0xff]
    %v1018 = vld [vmem:[%s1015 + $0x10] sm:$0xff]
    %v1019 = vld [vmem:[%s1015 + $0x18] sm:$0xff]
    %v1020 = vld [vmem:[%s1015 + $0x20] sm:$0xff]
    %v1021 = vld [vmem:[%s1015 + $0x28] sm:$0xff]
    %v1022 = vld [vmem:[%s1015 + $0x30] sm:$0xff]
    %v1023 = vld [vmem:[%s1015 + $0x38] sm:$0xff]
    %1024 = vmatprep.subr.mxu0 %v75
    %1025 = vmatpush1.msra.mxu0 %v74
    %1026 = vmatprep.subr.mxu0 %v77
    %1027 = vmatpush1.msra.mxu0 %v76
    %1028 = vmatprep.subr.mxu0 %v79
    %1029 = vmatpush1.msra.mxu0 %v78
    %1030 = vmatprep.subr.mxu0 %v81
    %1031 = vmatpush1.msra.mxu0 %v80
    %1032 = vmatprep.subr.mxu0 %v83
    %1033 = vmatpush1.msra.mxu0 %v82
    %1034 = vmatprep.subr.mxu0 %v85
    %1035 = vmatpush1.msra.mxu0 %v84
    %1036 = vmatprep.subr.mxu0 %v87
    %1037 = vmatpush1.msra.mxu0 %v86
    %1038 = vmatprep.subr.mxu0 %v89
    %1039 = vmatpush1.msra.mxu0 %v88
    %1040 = vmatprep.subr.mxu0 %v91
    %1041 = vmatpush1.msra.mxu0 %v90
    %1042 = vmatprep.subr.mxu0 %v93
    %1043 = vmatpush1.msra.mxu0 %v92
    %1044 = vmatprep.subr.mxu0 %v95
    %1045 = vmatpush1.msra.mxu0 %v94
    %1046 = vmatprep.subr.mxu0 %v97
    %1047 = vmatpush1.msra.mxu0 %v96
    %1048 = vmatprep.subr.mxu0 %v99
    %1049 = vmatpush1.msra.mxu0 %v98
    %1050 = vmatprep.subr.mxu0 %v101
    %1051 = vmatpush1.msra.mxu0 %v100
    %1052 = vmatprep.subr.mxu0 %v103
    %1053 = vmatpush1.msra.mxu0 %v102
    %1054 = vmatprep.subr.mxu0 %v105
    %1055 = vmatpush1.msra.mxu0 %v104
    %1056 = vmatprep.subr.mxu0 0.0
    %1057 = vmatpush1.msra.mxu0 0.0
    %1058 = vmatprep.subr.mxu0 0.0
    %1059 = vmatpush1.msra.mxu0 0.0
    %1060 = vmatprep.subr.mxu0 0.0
    %1061 = vmatpush1.msra.mxu0 0.0
    %1062 = vmatprep.subr.mxu0 0.0
    %1063 = vmatpush1.msra.mxu0 0.0
    %1064 = vmatprep.subr.mxu0 0.0
    %1065 = vmatpush1.msra.mxu0 0.0
    %1066 = vmatprep.subr.mxu0 0.0
    %1067 = vmatpush1.msra.mxu0 0.0
    %1068 = vmatprep.subr.mxu0 0.0
    %1069 = vmatpush1.msra.mxu0 0.0
    %1070 = vmatprep.subr.mxu0 0.0
    %1071 = vmatpush1.msra.mxu0 0.0
    %1072 = vmatprep.subr.mxu0 0.0
    %1073 = vmatpush1.msra.mxu0 0.0
    %1074 = vmatprep.subr.mxu0 0.0
    %1075 = vmatpush1.msra.mxu0 0.0
    %1076 = vmatprep.subr.mxu0 0.0
    %1077 = vmatpush1.msra.mxu0 0.0
    %1078 = vmatprep.subr.mxu0 0.0
    %1079 = vmatpush1.msra.mxu0 0.0
    %1080 = vmatprep.subr.mxu0 0.0
    %1081 = vmatpush1.msra.mxu0 0.0
    %1082 = vmatprep.subr.mxu0 0.0
    %1083 = vmatpush1.msra.mxu0 0.0
    %1084 = vmatprep.subr.mxu0 0.0
    %1085 = vmatpush1.msra.mxu0 0.0
    %1086 = vmatprep.subr.mxu0 0.0
    %1087 = vmatpush1.msra.mxu0 0.0
    %1088 = vmatprep.mubr.f32.mxu0 0.0
    %1089 = vmatmul.mubr.f32.gmra.mrb[0].mxu0 %v1011
    %v1090 = vpop.f32.mrb[0].mxu0
    %v1091 = vadd.f32 %v1016, %v1090
    %v1092 = vpop.f32.mrb[0].mxu0
    %v1093 = vadd.f32 %v1017, %v1092
    %1094 = vmatprep.mubr.f32.mxu0 0.0
    %1095 = vmatmul.mubr.f32.gmra.mrb[0].mxu0 %v1012
    %v1096 = vpop.f32.mrb[0].mxu0
    %v1097 = vadd.f32 %v1018, %v1096
    %v1098 = vpop.f32.mrb[0].mxu0
    %v1099 = vadd.f32 %v1019, %v1098
    %1100 = vmatprep.mubr.f32.mxu0 0.0
    %1101 = vmatmul.mubr.f32.gmra.mrb[0].mxu0 %v1013
    %v1102 = vpop.f32.mrb[0].mxu0
    %v1103 = vadd.f32 %v1020, %v1102
    %v1104 = vpop.f32.mrb[0].mxu0
    %v1105 = vadd.f32 %v1021, %v1104
    %1106 = vmatprep.mubr.f32.mxu0 0.0
    %1107 = vmatmul.mubr.f32.gmra.mrb[0].mxu0 %v1014
    %v1108 = vpop.f32.mrb[0].mxu0
    %v1109 = vadd.f32 %v1022, %v1108
    %v1110 = vpop.f32.mrb[0].mxu0
    %v1111 = vadd.f32 %v1023, %v1110
    %1112 = vdwg.mxu0
    %v1113 = vadd.f32 %v1091, %v111
    %v1114 = vadd.f32 %v1093, %v115
    %v1115 = vadd.f32 %v1097, %v111
    %v1116 = vadd.f32 %v1099, %v115
    %v1117 = vadd.f32 %v1103, %v111
    %v1118 = vadd.f32 %v1105, %v115
    %v1119 = vadd.f32 %v1109, %v111
    %v1120 = vadd.f32 %v1111, %v115
    %v1121 = vmax.f32 %v1113, %v1114
    %1122 = vmax.xlane.f32.xlu0 %v1121
    %v1123 = vpop.xlane.xlu0 %1122
    %v1124 = vmax.f32 %v1115, %v1116
    %1125 = vmax.xlane.f32.xlu0 %v1124
    %v1126 = vpop.xlane.xlu0 %1125
    %v1127 = vmax.f32 %v1117, %v1118
    %1128 = vmax.xlane.f32.xlu0 %v1127
    %v1129 = vpop.xlane.xlu0 %1128
    %v1130 = vmax.f32 %v1119, %v1120
    %1131 = vmax.xlane.f32.xlu0 %v1130
    %v1132 = vpop.xlane.xlu0 %1131
    %v1133 = vsub.f32 %v1113, %v1123
    %v1134 = vsub.f32 %v1114, %v1123
    %v1135 = vsub.f32 %v1115, %v1126
    %v1136 = vsub.f32 %v1116, %v1126
    %v1137 = vsub.f32 %v1117, %v1129
    %v1138 = vsub.f32 %v1118, %v1129
    %v1139 = vsub.f32 %v1119, %v1132
    %v1140 = vsub.f32 %v1120, %v1132
    %v1141 = vmul.f32 %v1133, 1.442695
    %v1142 = vpow.pop %v1141
    %v1143 = vmul.f32 %v1134, 1.442695
    %v1144 = vpow.pop %v1143
    %v1145 = vmul.f32 %v1135, 1.442695
    %v1146 = vpow.pop %v1145
    %v1147 = vmul.f32 %v1136, 1.442695
    %v1148 = vpow.pop %v1147
    %v1149 = vmul.f32 %v1137, 1.442695
    %v1150 = vpow.pop %v1149
    %v1151 = vmul.f32 %v1138, 1.442695
    %v1152 = vpow.pop %v1151
    %v1153 = vmul.f32 %v1139, 1.442695
    %v1154 = vpow.pop %v1153
    %v1155 = vmul.f32 %v1140, 1.442695
    %v1156 = vpow.pop %v1155
    %v1157 = vadd.f32 %v1142, %v1144
    %1158 = vadd.xlane.f32.xlu0 %v1157
    %v1159 = vpop.xlane.xlu0 %1158
    %v1160 = vadd.f32 %v1146, %v1148
    %1161 = vadd.xlane.f32.xlu0 %v1160
    %v1162 = vpop.xlane.xlu0 %1161
    %v1163 = vadd.f32 %v1150, %v1152
    %1164 = vadd.xlane.f32.xlu0 %v1163
    %v1165 = vpop.xlane.xlu0 %1164
    %v1166 = vadd.f32 %v1154, %v1156
    %1167 = vadd.xlane.f32.xlu0 %v1166
    %v1168 = vpop.xlane.xlu0 %1167
    %v1169 = vlog2.pop %v1159
    %v1170 = vmul.f32 %v1169, 0.6931472
    %v1171 = vlog2.pop %v1162
    %v1172 = vmul.f32 %v1171, 0.6931472
    %v1173 = vlog2.pop %v1165
    %v1174 = vmul.f32 %v1173, 0.6931472
    %v1175 = vlog2.pop %v1168
    %v1176 = vmul.f32 %v1175, 0.6931472
    %v1177 = vsub.f32 %v1133, %v1170
    %v1178 = vsub.f32 %v1135, %v1172
    %v1179 = vsub.f32 %v1137, %v1174
    %v1180 = vsub.f32 %v1139, %v1176
    %s1181 = scalar_lea.vmem [#allocation9], 160
    %1182 = vst [vmem:[%s1181] sm:$0xff] %v1177
    %1183 = vst [vmem:[%s1181 + $0x8] sm:$0xff] %v1178
    %1184 = vst [vmem:[%s1181 + $0x10] sm:$0xff] %v1179
    %1185 = vst [vmem:[%s1181 + $0x18] sm:$0xff] %v1180
    %1186 = vst [vmem:[#allocation2] sm:$0xff] %v1093
    %1187 = vst [vmem:[#allocation2 + $0x8] sm:$0xff] %v1099
    %1188 = vst [vmem:[#allocation2 + $0x10] sm:$0xff] %v1105
    %1189 = vst [vmem:[#allocation2 + $0x18] sm:$0xff] %v1111
    %v1190 = vld [vmem:[#allocation2] sm:$0xff]
    %v1191 = vld [vmem:[#allocation2 + $0x8] sm:$0xff]
    %v1192 = vld [vmem:[#allocation2 + $0x10] sm:$0xff]
    %v1193 = vld [vmem:[#allocation2 + $0x18] sm:$0xff]
    %s1194 = scalar_lea.vmem [#allocation3], 384
    %v1195 = vld [vmem:[%s1194] sm:$0xff]
    %v1196 = vld [vmem:[%s1194 + $0x8] sm:$0xff]
    %v1197 = vld [vmem:[%s1194 + $0x10] sm:$0xff]
    %v1198 = vld [vmem:[%s1194 + $0x18] sm:$0xff]
    %v1199 = vld [vmem:[%s1194 + $0x20] sm:$0xff]
    %v1200 = vld [vmem:[%s1194 + $0x28] sm:$0xff]
    %v1201 = vld [vmem:[%s1194 + $0x30] sm:$0xff]
    %v1202 = vld [vmem:[%s1194 + $0x38] sm:$0xff]
    %1203 = vmatprep.subr.mxu0 %v75
    %1204 = vmatpush1.msra.mxu0 %v74
    %1205 = vmatprep.subr.mxu0 %v77
    %1206 = vmatpush1.msra.mxu0 %v76
    %1207 = vmatprep.subr.mxu0 %v79
    %1208 = vmatpush1.msra.mxu0 %v78
    %1209 = vmatprep.subr.mxu0 %v81
    %1210 = vmatpush1.msra.mxu0 %v80
    %1211 = vmatprep.subr.mxu0 %v83
    %1212 = vmatpush1.msra.mxu0 %v82
    %1213 = vmatprep.subr.mxu0 %v85
    %1214 = vmatpush1.msra.mxu0 %v84
    %1215 = vmatprep.subr.mxu0 %v87
    %1216 = vmatpush1.msra.mxu0 %v86
    %1217 = vmatprep.subr.mxu0 %v89
    %1218 = vmatpush1.msra.mxu0 %v88
    %1219 = vmatprep.subr.mxu0 %v91
    %1220 = vmatpush1.msra.mxu0 %v90
    %1221 = vmatprep.subr.mxu0 %v93
    %1222 = vmatpush1.msra.mxu0 %v92
    %1223 = vmatprep.subr.mxu0 %v95
    %1224 = vmatpush1.msra.mxu0 %v94
    %1225 = vmatprep.subr.mxu0 %v97
    %1226 = vmatpush1.msra.mxu0 %v96
    %1227 = vmatprep.subr.mxu0 %v99
    %1228 = vmatpush1.msra.mxu0 %v98
    %1229 = vmatprep.subr.mxu0 %v101
    %1230 = vmatpush1.msra.mxu0 %v100
    %1231 = vmatprep.subr.mxu0 %v103
    %1232 = vmatpush1.msra.mxu0 %v102
    %1233 = vmatprep.subr.mxu0 %v105
    %1234 = vmatpush1.msra.mxu0 %v104
    %1235 = vmatprep.subr.mxu0 0.0
    %1236 = vmatpush1.msra.mxu0 0.0
    %1237 = vmatprep.subr.mxu0 0.0
    %1238 = vmatpush1.msra.mxu0 0.0
    %1239 = vmatprep.subr.mxu0 0.0
    %1240 = vmatpush1.msra.mxu0 0.0
    %1241 = vmatprep.subr.mxu0 0.0
    %1242 = vmatpush1.msra.mxu0 0.0
    %1243 = vmatprep.subr.mxu0 0.0
    %1244 = vmatpush1.msra.mxu0 0.0
    %1245 = vmatprep.subr.mxu0 0.0
    %1246 = vmatpush1.msra.mxu0 0.0
    %1247 = vmatprep.subr.mxu0 0.0
    %1248 = vmatpush1.msra.mxu0 0.0
    %1249 = vmatprep.subr.mxu0 0.0
    %1250 = vmatpush1.msra.mxu0 0.0
    %1251 = vmatprep.subr.mxu0 0.0
    %1252 = vmatpush1.msra.mxu0 0.0
    %1253 = vmatprep.subr.mxu0 0.0
    %1254 = vmatpush1.msra.mxu0 0.0
    %1255 = vmatprep.subr.mxu0 0.0
    %1256 = vmatpush1.msra.mxu0 0.0
    %1257 = vmatprep.subr.mxu0 0.0
    %1258 = vmatpush1.msra.mxu0 0.0
    %1259 = vmatprep.subr.mxu0 0.0
    %1260 = vmatpush1.msra.mxu0 0.0
    %1261 = vmatprep.subr.mxu0 0.0
    %1262 = vmatpush1.msra.mxu0 0.0
    %1263 = vmatprep.subr.mxu0 0.0
    %1264 = vmatpush1.msra.mxu0 0.0
    %1265 = vmatprep.subr.mxu0 0.0
    %1266 = vmatpush1.msra.mxu0 0.0
    %1267 = vmatprep.mubr.f32.mxu0 0.0
    %1268 = vmatmul.mubr.f32.gmra.mrb[0].mxu0 %v1190
    %v1269 = vpop.f32.mrb[0].mxu0
    %v1270 = vadd.f32 %v1195, %v1269
    %v1271 = vpop.f32.mrb[0].mxu0
    %v1272 = vadd.f32 %v1196, %v1271
    %1273 = vmatprep.mubr.f32.mxu0 0.0
    %1274 = vmatmul.mubr.f32.gmra.mrb[0].mxu0 %v1191
    %v1275 = vpop.f32.mrb[0].mxu0
    %v1276 = vadd.f32 %v1197, %v1275
    %v1277 = vpop.f32.mrb[0].mxu0
    %v1278 = vadd.f32 %v1198, %v1277
    %1279 = vmatprep.mubr.f32.mxu0 0.0
    %1280 = vmatmul.mubr.f32.gmra.mrb[0].mxu0 %v1192
    %v1281 = vpop.f32.mrb[0].mxu0
    %v1282 = vadd.f32 %v1199, %v1281
    %v1283 = vpop.f32.mrb[0].mxu0
    %v1284 = vadd.f32 %v1200, %v1283
    %1285 = vmatprep.mubr.f32.mxu0 0.0
    %1286 = vmatmul.mubr.f32.gmra.mrb[0].mxu0 %v1193
    %v1287 = vpop.f32.mrb[0].mxu0
    %v1288 = vadd.f32 %v1201, %v1287
    %v1289 = vpop.f32.mrb[0].mxu0
    %v1290 = vadd.f32 %v1202, %v1289
    %1291 = vdwg.mxu0
    %v1292 = vadd.f32 %v1270, %v111
    %v1293 = vadd.f32 %v1272, %v115
    %v1294 = vadd.f32 %v1276, %v111
    %v1295 = vadd.f32 %v1278, %v115
    %v1296 = vadd.f32 %v1282, %v111
    %v1297 = vadd.f32 %v1284, %v115
    %v1298 = vadd.f32 %v1288, %v111
    %v1299 = vadd.f32 %v1290, %v115
    %v1300 = vmax.f32 %v1292, %v1293
    %1301 = vmax.xlane.f32.xlu0 %v1300
    %v1302 = vpop.xlane.xlu0 %1301
    %v1303 = vmax.f32 %v1294, %v1295
    %1304 = vmax.xlane.f32.xlu0 %v1303
    %v1305 = vpop.xlane.xlu0 %1304
    %v1306 = vmax.f32 %v1296, %v1297
    %1307 = vmax.xlane.f32.xlu0 %v1306
    %v1308 = vpop.xlane.xlu0 %1307
    %v1309 = vmax.f32 %v1298, %v1299
    %1310 = vmax.xlane.f32.xlu0 %v1309
    %v1311 = vpop.xlane.xlu0 %1310
    %v1312 = vsub.f32 %v1292, %v1302
    %v1313 = vsub.f32 %v1293, %v1302
    %v1314 = vsub.f32 %v1294, %v1305
    %v1315 = vsub.f32 %v1295, %v1305
    %v1316 = vsub.f32 %v1296, %v1308
    %v1317 = vsub.f32 %v1297, %v1308
    %v1318 = vsub.f32 %v1298, %v1311
    %v1319 = vsub.f32 %v1299, %v1311
    %v1320 = vmul.f32 %v1312, 1.442695
    %v1321 = vpow.pop %v1320
    %v1322 = vmul.f32 %v1313, 1.442695
    %v1323 = vpow.pop %v1322
    %v1324 = vmul.f32 %v1314, 1.442695
    %v1325 = vpow.pop %v1324
    %v1326 = vmul.f32 %v1315, 1.442695
    %v1327 = vpow.pop %v1326
    %v1328 = vmul.f32 %v1316, 1.442695
    %v1329 = vpow.pop %v1328
    %v1330 = vmul.f32 %v1317, 1.442695
    %v1331 = vpow.pop %v1330
    %v1332 = vmul.f32 %v1318, 1.442695
    %v1333 = vpow.pop %v1332
    %v1334 = vmul.f32 %v1319, 1.442695
    %v1335 = vpow.pop %v1334
    %v1336 = vadd.f32 %v1321, %v1323
    %1337 = vadd.xlane.f32.xlu0 %v1336
    %v1338 = vpop.xlane.xlu0 %1337
    %v1339 = vadd.f32 %v1325, %v1327
    %1340 = vadd.xlane.f32.xlu0 %v1339
    %v1341 = vpop.xlane.xlu0 %1340
    %v1342 = vadd.f32 %v1329, %v1331
    %1343 = vadd.xlane.f32.xlu0 %v1342
    %v1344 = vpop.xlane.xlu0 %1343
    %v1345 = vadd.f32 %v1333, %v1335
    %1346 = vadd.xlane.f32.xlu0 %v1345
    %v1347 = vpop.xlane.xlu0 %1346
    %v1348 = vlog2.pop %v1338
    %v1349 = vmul.f32 %v1348, 0.6931472
    %v1350 = vlog2.pop %v1341
    %v1351 = vmul.f32 %v1350, 0.6931472
    %v1352 = vlog2.pop %v1344
    %v1353 = vmul.f32 %v1352, 0.6931472
    %v1354 = vlog2.pop %v1347
    %v1355 = vmul.f32 %v1354, 0.6931472
    %v1356 = vsub.f32 %v1312, %v1349
    %v1357 = vsub.f32 %v1314, %v1351
    %v1358 = vsub.f32 %v1316, %v1353
    %v1359 = vsub.f32 %v1318, %v1355
    %s1360 = scalar_lea.vmem [#allocation9], 192
    %1361 = vst [vmem:[%s1360] sm:$0xff] %v1356
    %1362 = vst [vmem:[%s1360 + $0x8] sm:$0xff] %v1357
    %1363 = vst [vmem:[%s1360 + $0x10] sm:$0xff] %v1358
    %1364 = vst [vmem:[%s1360 + $0x18] sm:$0xff] %v1359
    %1365 = vst [vmem:[#allocation2] sm:$0xff] %v1272
    %1366 = vst [vmem:[#allocation2 + $0x8] sm:$0xff] %v1278
    %1367 = vst [vmem:[#allocation2 + $0x10] sm:$0xff] %v1284
    %1368 = vst [vmem:[#allocation2 + $0x18] sm:$0xff] %v1290
    %v1369 = vld [vmem:[#allocation2] sm:$0xff]
    %v1370 = vld [vmem:[#allocation2 + $0x8] sm:$0xff]
    %v1371 = vld [vmem:[#allocation2 + $0x10] sm:$0xff]
    %v1372 = vld [vmem:[#allocation2 + $0x18] sm:$0xff]
    %s1373 = scalar_lea.vmem [#allocation3], 448
    %v1374 = vld [vmem:[%s1373] sm:$0xff]
    %v1375 = vld [vmem:[%s1373 + $0x8] sm:$0xff]
    %v1376 = vld [vmem:[%s1373 + $0x10] sm:$0xff]
    %v1377 = vld [vmem:[%s1373 + $0x18] sm:$0xff]
    %v1378 = vld [vmem:[%s1373 + $0x20] sm:$0xff]
    %v1379 = vld [vmem:[%s1373 + $0x28] sm:$0xff]
    %v1380 = vld [vmem:[%s1373 + $0x30] sm:$0xff]
    %v1381 = vld [vmem:[%s1373 + $0x38] sm:$0xff]
    %1382 = vmatprep.subr.mxu0 %v75
    %1383 = vmatpush1.msra.mxu0 %v74
    %1384 = vmatprep.subr.mxu0 %v77
    %1385 = vmatpush1.msra.mxu0 %v76
    %1386 = vmatprep.subr.mxu0 %v79
    %1387 = vmatpush1.msra.mxu0 %v78
    %1388 = vmatprep.subr.mxu0 %v81
    %1389 = vmatpush1.msra.mxu0 %v80
    %1390 = vmatprep.subr.mxu0 %v83
    %1391 = vmatpush1.msra.mxu0 %v82
    %1392 = vmatprep.subr.mxu0 %v85
    %1393 = vmatpush1.msra.mxu0 %v84
    %1394 = vmatprep.subr.mxu0 %v87
    %1395 = vmatpush1.msra.mxu0 %v86
    %1396 = vmatprep.subr.mxu0 %v89
    %1397 = vmatpush1.msra.mxu0 %v88
    %1398 = vmatprep.subr.mxu0 %v91
    %1399 = vmatpush1.msra.mxu0 %v90
    %1400 = vmatprep.subr.mxu0 %v93
    %1401 = vmatpush1.msra.mxu0 %v92
    %1402 = vmatprep.subr.mxu0 %v95
    %1403 = vmatpush1.msra.mxu0 %v94
    %1404 = vmatprep.subr.mxu0 %v97
    %1405 = vmatpush1.msra.mxu0 %v96
    %1406 = vmatprep.subr.mxu0 %v99
    %1407 = vmatpush1.msra.mxu0 %v98
    %1408 = vmatprep.subr.mxu0 %v101
    %1409 = vmatpush1.msra.mxu0 %v100
    %1410 = vmatprep.subr.mxu0 %v103
    %1411 = vmatpush1.msra.mxu0 %v102
    %1412 = vmatprep.subr.mxu0 %v105
    %1413 = vmatpush1.msra.mxu0 %v104
    %1414 = vmatprep.subr.mxu0 0.0
    %1415 = vmatpush1.msra.mxu0 0.0
    %1416 = vmatprep.subr.mxu0 0.0
    %1417 = vmatpush1.msra.mxu0 0.0
    %1418 = vmatprep.subr.mxu0 0.0
    %1419 = vmatpush1.msra.mxu0 0.0
    %1420 = vmatprep.subr.mxu0 0.0
    %1421 = vmatpush1.msra.mxu0 0.0
    %1422 = vmatprep.subr.mxu0 0.0
    %1423 = vmatpush1.msra.mxu0 0.0
    %1424 = vmatprep.subr.mxu0 0.0
    %1425 = vmatpush1.msra.mxu0 0.0
    %1426 = vmatprep.subr.mxu0 0.0
    %1427 = vmatpush1.msra.mxu0 0.0
    %1428 = vmatprep.subr.mxu0 0.0
    %1429 = vmatpush1.msra.mxu0 0.0
    %1430 = vmatprep.subr.mxu0 0.0
    %1431 = vmatpush1.msra.mxu0 0.0
    %1432 = vmatprep.subr.mxu0 0.0
    %1433 = vmatpush1.msra.mxu0 0.0
    %1434 = vmatprep.subr.mxu0 0.0
    %1435 = vmatpush1.msra.mxu0 0.0
    %1436 = vmatprep.subr.mxu0 0.0
    %1437 = vmatpush1.msra.mxu0 0.0
    %1438 = vmatprep.subr.mxu0 0.0
    %1439 = vmatpush1.msra.mxu0 0.0
    %1440 = vmatprep.subr.mxu0 0.0
    %1441 = vmatpush1.msra.mxu0 0.0
    %1442 = vmatprep.subr.mxu0 0.0
    %1443 = vmatpush1.msra.mxu0 0.0
    %1444 = vmatprep.subr.mxu0 0.0
    %1445 = vmatpush1.msra.mxu0 0.0
    %1446 = vmatprep.mubr.f32.mxu0 0.0
    %1447 = vmatmul.mubr.f32.gmra.mrb[0].mxu0 %v1369
    %v1448 = vpop.f32.mrb[0].mxu0
    %v1449 = vadd.f32 %v1374, %v1448
    %v1450 = vpop.f32.mrb[0].mxu0
    %v1451 = vadd.f32 %v1375, %v1450
    %1452 = vmatprep.mubr.f32.mxu0 0.0
    %1453 = vmatmul.mubr.f32.gmra.mrb[0].mxu0 %v1370
    %v1454 = vpop.f32.mrb[0].mxu0
    %v1455 = vadd.f32 %v1376, %v1454
    %v1456 = vpop.f32.mrb[0].mxu0
    %v1457 = vadd.f32 %v1377, %v1456
    %1458 = vmatprep.mubr.f32.mxu0 0.0
    %1459 = vmatmul.mubr.f32.gmra.mrb[0].mxu0 %v1371
    %v1460 = vpop.f32.mrb[0].mxu0
    %v1461 = vadd.f32 %v1378, %v1460
    %v1462 = vpop.f32.mrb[0].mxu0
    %v1463 = vadd.f32 %v1379, %v1462
    %1464 = vmatprep.mubr.f32.mxu0 0.0
    %1465 = vmatmul.mubr.f32.gmra.mrb[0].mxu0 %v1372
    %v1466 = vpop.f32.mrb[0].mxu0
    %v1467 = vadd.f32 %v1380, %v1466
    %v1468 = vpop.f32.mrb[0].mxu0
    %v1469 = vadd.f32 %v1381, %v1468
    %1470 = vdwg.mxu0
    %v1471 = vadd.f32 %v1449, %v111
    %v1472 = vadd.f32 %v1451, %v115
    %v1473 = vadd.f32 %v1455, %v111
    %v1474 = vadd.f32 %v1457, %v115
    %v1475 = vadd.f32 %v1461, %v111
    %v1476 = vadd.f32 %v1463, %v115
    %v1477 = vadd.f32 %v1467, %v111
    %v1478 = vadd.f32 %v1469, %v115
    %v1479 = vmax.f32 %v1471, %v1472
    %1480 = vmax.xlane.f32.xlu0 %v1479
    %v1481 = vpop.xlane.xlu0 %1480
    %v1482 = vmax.f32 %v1473, %v1474
    %1483 = vmax.xlane.f32.xlu0 %v1482
    %v1484 = vpop.xlane.xlu0 %1483
    %v1485 = vmax.f32 %v1475, %v1476
    %1486 = vmax.xlane.f32.xlu0 %v1485
    %v1487 = vpop.xlane.xlu0 %1486
    %v1488 = vmax.f32 %v1477, %v1478
    %1489 = vmax.xlane.f32.xlu0 %v1488
    %v1490 = vpop.xlane.xlu0 %1489
    %v1491 = vsub.f32 %v1471, %v1481
    %v1492 = vsub.f32 %v1472, %v1481
    %v1493 = vsub.f32 %v1473, %v1484
    %v1494 = vsub.f32 %v1474, %v1484
    %v1495 = vsub.f32 %v1475, %v1487
    %v1496 = vsub.f32 %v1476, %v1487
    %v1497 = vsub.f32 %v1477, %v1490
    %v1498 = vsub.f32 %v1478, %v1490
    %v1499 = vmul.f32 %v1491, 1.442695
    %v1500 = vpow.pop %v1499
    %v1501 = vmul.f32 %v1492, 1.442695
    %v1502 = vpow.pop %v1501
    %v1503 = vmul.f32 %v1493, 1.442695
    %v1504 = vpow.pop %v1503
    %v1505 = vmul.f32 %v1494, 1.442695
    %v1506 = vpow.pop %v1505
    %v1507 = vmul.f32 %v1495, 1.442695
    %v1508 = vpow.pop %v1507
    %v1509 = vmul.f32 %v1496, 1.442695
    %v1510 = vpow.pop %v1509
    %v1511 = vmul.f32 %v1497, 1.442695
    %v1512 = vpow.pop %v1511
    %v1513 = vmul.f32 %v1498, 1.442695
    %v1514 = vpow.pop %v1513
    %v1515 = vadd.f32 %v1500, %v1502
    %1516 = vadd.xlane.f32.xlu0 %v1515
    %v1517 = vpop.xlane.xlu0 %1516
    %v1518 = vadd.f32 %v1504, %v1506
    %1519 = vadd.xlane.f32.xlu0 %v1518
    %v1520 = vpop.xlane.xlu0 %1519
    %v1521 = vadd.f32 %v1508, %v1510
    %1522 = vadd.xlane.f32.xlu0 %v1521
    %v1523 = vpop.xlane.xlu0 %1522
    %v1524 = vadd.f32 %v1512, %v1514
    %1525 = vadd.xlane.f32.xlu0 %v1524
    %v1526 = vpop.xlane.xlu0 %1525
    %v1527 = vlog2.pop %v1517
    %v1528 = vmul.f32 %v1527, 0.6931472
    %v1529 = vlog2.pop %v1520
    %v1530 = vmul.f32 %v1529, 0.6931472
    %v1531 = vlog2.pop %v1523
    %v1532 = vmul.f32 %v1531, 0.6931472
    %v1533 = vlog2.pop %v1526
    %v1534 = vmul.f32 %v1533, 0.6931472
    %v1535 = vsub.f32 %v1491, %v1528
    %v1536 = vsub.f32 %v1493, %v1530
    %v1537 = vsub.f32 %v1495, %v1532
    %v1538 = vsub.f32 %v1497, %v1534
    %s1539 = scalar_lea.vmem [#allocation9], 224
    %1540 = vst [vmem:[%s1539] sm:$0xff] %v1535
    %1541 = vst [vmem:[%s1539 + $0x8] sm:$0xff] %v1536
    %1542 = vst [vmem:[%s1539 + $0x10] sm:$0xff] %v1537
    %1543 = vst [vmem:[%s1539 + $0x18] sm:$0xff] %v1538
    %1544 = vst [vmem:[#allocation2] sm:$0xff] %v1451
    %1545 = vst [vmem:[#allocation2 + $0x8] sm:$0xff] %v1457
    %1546 = vst [vmem:[#allocation2 + $0x10] sm:$0xff] %v1463
    %1547 = vst [vmem:[#allocation2 + $0x18] sm:$0xff] %v1469
    %v1548 = vld [vmem:[#allocation2] sm:$0xff]
    %v1549 = vld [vmem:[#allocation2 + $0x8] sm:$0xff]
    %v1550 = vld [vmem:[#allocation2 + $0x10] sm:$0xff]
    %v1551 = vld [vmem:[#allocation2 + $0x18] sm:$0xff]
    %1552 = vst [vmem:[#allocation10] sm:$0xff] %v1548
    %1553 = vst [vmem:[#allocation10 + $0x8] sm:$0xff] %v1549
    %1554 = vst [vmem:[#allocation10 + $0x10] sm:$0xff] %v1550
    %1555 = vst [vmem:[#allocation10 + $0x18] sm:$0xff] %v1551
    // Predicated region
    $region34: #{tpu_custom_call.1} parent=1 // pred_check
      _
    $region35: #{tpu_custom_call.1} parent=1 // pred_check_branch
      %1557 = sbr.rel (0) target = $region37
    $region36: #{tpu_custom_call.1} parent=1 // pred_region
      %s1559 = ssub.s32 4096, 4096
      %1560 = vsyncadd [#allocation5], %s1559
      %s1561 = sshll.u32 [#allocation9], 4
      %s1562 = int_to_ptr.vmem [resolvable:$true] %s1561
      %1567 = dma.vmem_to_hbm [thread:$0]  %s1562, 4096, %s4, [#allocation5], 128, 128, 8
    $region37: #{tpu_custom_call.1} parent=1 // pred_fallthru
      _
    // Predicated region
    $region38: #{tpu_custom_call.1} parent=1 // pred_check
      _
    $region39: #{tpu_custom_call.1} parent=1 // pred_check_branch
      %1569 = sbr.rel (0) target = $region41
    $region40: #{tpu_custom_call.1} parent=1 // pred_region
      %s1571 = ssub.s32 512, 512
      %1572 = vsyncadd [#allocation11], %s1571
      %s1573 = sshll.u32 [#allocation10], 4
      %s1574 = int_to_ptr.vmem [resolvable:$true] %s1573
      %1579 = dma.vmem_to_hbm [thread:$0]  %s1574, 512, %s5, [#allocation11], 128, 128, 8
    $region41: #{tpu_custom_call.1} parent=1 // pred_fallthru
      _
    // Predicated region
    $region42: #{tpu_custom_call.1} parent=1 // pred_check
      _
    $region43: #{tpu_custom_call.1} parent=1 // pred_check_branch
      %1581 = sbr.rel (0) target = $region45
    $region44: #{tpu_custom_call.1} parent=1 // pred_region
      %1582 = dma.done [#allocation5], 4096
    $region45: #{tpu_custom_call.1} parent=1 // pred_fallthru
      _
    // Predicated region
    $region46: #{tpu_custom_call.1} parent=1 // pred_check
      _
    $region47: #{tpu_custom_call.1} parent=1 // pred_check_branch
      %1584 = sbr.rel (0) target = $region49
    $region48: #{tpu_custom_call.1} parent=1 // pred_region
      %1585 = dma.done [#allocation11], 512
    $region49: #{tpu_custom_call.1} parent=1 // pred_fallthru
      _
    %1586 = vsyncpa [#allocation4], 1
    %1587 = vsyncpa [#allocation7], 1
    %1588 = vsyncpa [#allocation5], 1
    %1589 = vsyncpa [#allocation11], 1

</llo_original>
